<compile_context>
chip_gen: v7x
topology: tpu7x:2x2x1
jax: 0.10.0
libtpu: 0.0.40
codegen_flags: <defaults>
</compile_context>

<pallas_src>
import functools

import jax
import jax.numpy as jnp
from jax import lax
from jax.experimental import pallas as pl
from jax.experimental.pallas import tpu as pltpu


def _round_up(n, m):
    return ((n + m - 1) // m) * m


def _sigmoid(x):
    # sigmoid(x) == 0.5 * tanh(x / 2) + 0.5 : a single EUP tanh instead of exp + recip.
    return 0.5 * jnp.tanh(0.5 * x) + 0.5


def _pad_gate_axis(w, h, hp):
    """Zero-pad a gate-stacked [4h, ...] array to [4hp, ...] keeping i,f,g,o blocks."""
    if hp == h:
        return w
    parts = jnp.split(w, 4, axis=0)
    pad = [(0, hp - h)] + [(0, 0)] * (w.ndim - 1)
    return jnp.concatenate([jnp.pad(p, pad) for p in parts], axis=0)


# ----------------------------------------------------------------------------
# Fused kernel: chunk input projection + LSTM recurrence over `time_block` steps.
# Grid = (batch_chunks [parallel], time_chunks [arbitrary]).
# ----------------------------------------------------------------------------
def _make_lstm_kernel(with_states):
    def kernel(lens_ref, x_ref, wih_ref, whh_ref, b_ref, *refs):
        """
        lens_ref : (Bb, 1)  int32   sequence lengths for this batch chunk
        x_ref    : (T, Bb, D)       input chunk (mm_dtype)
        wih_ref  : (D, 4Hp)         pre-transposed input->gates weight (mm_dtype)
        whh_ref  : (Hp, 4Hp)        pre-transposed hidden->gates weight (mm_dtype)
        b_ref    : (1, 4Hp) f32     b_ih + b_hh
        [states_ref : (T, Bb, Hp) f32]  optional masked per-step hidden states
        last_ref : (Bb, Hp) f32     accumulator: hidden state at t = length-1
        pre_scr  : (T, Bb, 4Hp) f32 chunk pre-activations (single-buffered scratch)
        h_scr/c_scr : (Bb, Hp) f32  carries across time chunks
        """
        if with_states:
            states_ref, last_ref, pre_scr, h_scr, c_scr = refs
        else:
            states_ref = None
            last_ref, pre_scr, h_scr, c_scr = refs

        T, Bb, D = x_ref.shape
        Hp = h_scr.shape[-1]
        G = 4 * Hp

        @pl.when(pl.program_id(1) == 0)
        def _():
            h_scr[...] = jnp.zeros_like(h_scr)
            c_scr[...] = jnp.zeros_like(c_scr)
            last_ref[...] = jnp.zeros_like(last_ref)

        # Fused input projection for the whole chunk: one MXU-friendly matmul,
        # f32 accumulation (bf16 operands by default).
        x_chunk = x_ref[...].reshape(T * Bb, D)
        pre = jnp.dot(x_chunk, wih_ref[...], preferred_element_type=jnp.float32)
        pre_scr[...] = (pre + b_ref[...]).reshape(T, Bb, G)

        whh = whh_ref[...]               # (Hp, 4Hp): no per-step transpose
        lens_col = lens_ref[...]         # (Bb, 1) int32
        t0 = pl.program_id(1) * T

        def step(tt, carry):
            h, c, last = carry
            gates = pre_scr[tt] + jnp.dot(h.astype(whh.dtype), whh,
                                          preferred_element_type=jnp.float32)
            # PyTorch LSTM gate order: i, f, g, o (lane-aligned slices: Hp % 128 == 0)
            i_g = _sigmoid(gates[:, 0 * Hp:1 * Hp])
            f_g = _sigmoid(gates[:, 1 * Hp:2 * Hp])
            g_g = jnp.tanh(gates[:, 2 * Hp:3 * Hp])
            o_g = _sigmoid(gates[:, 3 * Hp:4 * Hp])
            c_new = f_g * c + i_g * g_g
            h_new = o_g * jnp.tanh(c_new)

            t_cur = t0 + tt
            valid = lens_col > t_cur              # (Bb, 1) cheap VPU mask
            is_last = lens_col == (t_cur + 1)
            if with_states:
                states_ref[tt] = jnp.where(valid, h_new, 0.0)
            last = jnp.where(is_last, h_new, last)
            return h_new, c_new, last

        h, c, last = lax.fori_loop(
            0, T, step, (h_scr[...], c_scr[...], last_ref[...]), unroll=min(T, 8))
        h_scr[...] = h
        c_scr[...] = c
        last_ref[...] = last

    return kernel


# ----------------------------------------------------------------------------
# Wrapper: AttentiveRNN.forward (attention=False)
# ----------------------------------------------------------------------------
def attentive_rnn_forward(x, lengths, w_ih, w_hh, b_ih, b_hh, *,
                          time_block=16, batch_block=128,
                          mm_dtype=jnp.bfloat16, return_hidden=False):
    """Returns out [B, H] (= last unpadded hidden state); (out, states [B, L, H]) if
    return_hidden=True.

    batch_block: pick so that B_pad // batch_block >= 2 on v7x (2 TensorCores).
    mm_dtype: dtype of matmul operands / streamed x and weights; accumulation and all
              gate math stay f32.
    """
    B, L, D = x.shape
    H = w_hh.shape[1]
    Hp = _round_up(H, 128)               # lane-align gate slices and H-wide stores
    G = 4 * Hp

    tb = min(time_block, L)
    bb = min(batch_block, _round_up(B, 8))
    l_pad = _round_up(L, tb)
    b_pad = _round_up(B, bb)
    n_b, n_t = b_pad // bb, l_pad // tb

    # --- weight layout: gate-pad to Hp, pre-transpose once (lane axis = 4Hp) ---
    w_ih_p = _pad_gate_axis(w_ih.astype(jnp.float32), H, Hp)                # [4Hp, D]
    w_hh_p = _pad_gate_axis(
        jnp.pad(w_hh.astype(jnp.float32), ((0, 0), (0, Hp - H))), H, Hp)     # [4Hp, Hp]
    wih_t = jnp.transpose(w_ih_p).astype(mm_dtype)                           # [D, 4Hp]
    whh_t = jnp.transpose(w_hh_p).astype(mm_dtype)                           # [Hp, 4Hp]
    bias = _pad_gate_axis((b_ih + b_hh).astype(jnp.float32), H, Hp).reshape(1, G)

    # --- time-major, zero-padded input (bf16 stream by default) ---
    x_tm = jnp.transpose(x, (1, 0, 2)).astype(mm_dtype)                      # [L, B, D]
    x_tm = jnp.pad(x_tm, ((0, l_pad - L), (0, b_pad - B), (0, 0)))

    # Lengths as a tiny [B_pad, 1] int32 block (padded rows -> length 0 -> masked out).
    lens2d = jnp.zeros((b_pad, 1), jnp.int32).at[:B, 0].set(lengths.astype(jnp.int32))

    # --- VMEM budget (v7x has 64 MiB): explicit scoped limit ---
    itemsize = jnp.dtype(mm_dtype).itemsize
    vmem_bytes = 2 * (tb * bb * D * itemsize + bb * 4 + bb * Hp * 4)
    if return_hidden:
        vmem_bytes += 2 * tb * bb * Hp * 4
    vmem_bytes += (D * G + Hp * G) * itemsize + G * 4      # single-buffered weights/bias
    vmem_bytes += tb * bb * G * 4 + 2 * bb * Hp * 4        # scratch
    vmem_limit = int(min(56 * 2**20, max(2 * vmem_bytes, 4 * 2**20)))

    in_specs = [
        pl.BlockSpec((bb, 1), lambda b, t: (b, 0)),                          # lengths
        pl.BlockSpec((tb, bb, D), lambda b, t: (t, b, 0)),                   # x chunk
        pl.BlockSpec((D, G), lambda b, t: (0, 0),
                     pipeline_mode=pl.Buffered(1)),                          # W_ih^T
        pl.BlockSpec((Hp, G), lambda b, t: (0, 0),
                     pipeline_mode=pl.Buffered(1)),                          # W_hh^T
        pl.BlockSpec((1, G), lambda b, t: (0, 0),
                     pipeline_mode=pl.Buffered(1)),                          # bias
    ]

    out_shapes = []
    out_specs = []
    if return_hidden:
        out_shapes.append(jax.ShapeDtypeStruct((l_pad, b_pad, Hp), jnp.float32))
        out_specs.append(pl.BlockSpec((tb, bb, Hp), lambda b, t: (t, b, 0)))
    out_shapes.append(jax.ShapeDtypeStruct((b_pad, Hp), jnp.float32))
    out_specs.append(pl.BlockSpec((bb, Hp), lambda b, t: (b, 0)))            # accumulator

    grid_spec = pltpu.PrefetchScalarGridSpec(
        num_scalar_prefetch=0,
        grid=(n_b, n_t),
        in_specs=in_specs,
        out_specs=out_specs if return_hidden else out_specs[0],
        scratch_shapes=[
            pltpu.VMEM((tb, bb, G), jnp.float32),    # chunk pre-activations
            pltpu.VMEM((bb, Hp), jnp.float32),       # h carry
            pltpu.VMEM((bb, Hp), jnp.float32),       # c carry
        ],
    )

    results = pl.pallas_call(
        _make_lstm_kernel(return_hidden),
        out_shape=tuple(out_shapes) if return_hidden else out_shapes[0],
        grid_spec=grid_spec,
        compiler_params=pltpu.CompilerParams(
            dimension_semantics=("parallel", "arbitrary"),
            vmem_limit_bytes=vmem_limit),
    )(lens2d, x_tm, wih_t, whh_t, bias)

    if return_hidden:
        states_tm, last = results
        out = last[:B, :H]
        # Post-hoc transpose only on the optional debug path; the default module
        # output (return_hidden=False) never materializes `states` at all.
        states = jnp.transpose(states_tm[:L, :B, :H], (1, 0, 2))             # [B, L, H]
        return out, states
    return results[:B, :H]


# ----------------------------------------------------------------------------
# Pure-JAX reference for verification
# ----------------------------------------------------------------------------
def _lstm_reference(x, lengths, w_ih, w_hh, b_ih, b_hh):
    B, L, D = x.shape
    H = w_hh.shape[1]
    b = b_ih + b_hh

    def step(carry, x_t):
        h, c = carry
        gates = x_t @ w_ih.T + h @ w_hh.T + b
        i, f, g, o = jnp.split(gates, 4, axis=-1)
        i, f, o = jax.nn.sigmoid(i), jax.nn.sigmoid(f), jax.nn.sigmoid(o)
        g = jnp.tanh(g)
        c = f * c + i * g
        h = o * jnp.tanh(c)
        return (h, c), h

    init = (jnp.zeros((B, H), jnp.float32), jnp.zeros((B, H), jnp.float32))
    _, hs = lax.scan(step, init, jnp.transpose(x, (1, 0, 2)))
    hs = jnp.transpose(hs, (1, 0, 2))                                        # [B, L, H]
    mask = (jnp.arange(L)[None, :] < lengths[:, None])[..., None]
    states = jnp.where(mask, hs, 0.0)
    last = jnp.take_along_axis(hs, (lengths - 1)[:, None, None], axis=1)[:, 0, :]
    return last, states


if __name__ == "__main__":
    # ----- Test 1: tiny shape, f32 matmuls, states requested, time-chunk carry (n_t=2) -----
    B, L, D, H = 2, 8, 16, 32
    key = jax.random.PRNGKey(0)
    ks = jax.random.split(key, 5)
    x = jax.random.normal(ks[0], (B, L, D), jnp.float32)
    lengths = jnp.array([8, 5], jnp.int32)

    bound = 1.0 / (H ** 0.5)   # PyTorch nn.LSTM init range
    w_ih = jax.random.uniform(ks[1], (4 * H, D), jnp.float32, -bound, bound)
    w_hh = jax.random.uniform(ks[2], (4 * H, H), jnp.float32, -bound, bound)
    b_ih = jax.random.uniform(ks[3], (4 * H,), jnp.float32, -bound, bound)
    b_hh = jax.random.uniform(ks[4], (4 * H,), jnp.float32, -bound, bound)

    ref_out, ref_states = _lstm_reference(x, lengths, w_ih, w_hh, b_ih, b_hh)

    fwd_f32 = jax.jit(functools.partial(
        attentive_rnn_forward, time_block=4, batch_block=8,
        mm_dtype=jnp.float32, return_hidden=True))
    out, states = jax.block_until_ready(fwd_f32(x, lengths, w_ih, w_hh, b_ih, b_hh))
    assert out.shape == (B, H) and states.shape == (B, L, H)
    assert jnp.allclose(out, ref_out, atol=1e-3, rtol=1e-3)
    assert jnp.allclose(states, ref_states, atol=1e-3, rtol=1e-3)

    # ----- Test 2: default (bf16 operands, out only -> module's actual return) -----
    fwd_default = jax.jit(attentive_rnn_forward)
    out2 = jax.block_until_ready(fwd_default(x, lengths, w_ih, w_hh, b_ih, b_hh))
    assert out2.shape == (B, H)
    assert jnp.allclose(out2, ref_out, atol=2.5e-2, rtol=2.5e-2)

    # ----- Test 3: lane-aligned H=128, ragged lengths, n_b=2 and n_t=3 -----
    B3, L3, D3, H3 = 16, 24, 64, 128
    ks3 = jax.random.split(jax.random.PRNGKey(1), 5)
    x3 = jax.random.normal(ks3[0], (B3, L3, D3), jnp.float32)
    lengths3 = jnp.array([24, 1, 17, 5, 24, 9, 3, 13, 2, 20, 7, 24, 11, 6, 19, 4],
                         jnp.int32)
    bound3 = 1.0 / (H3 ** 0.5)
    w_ih3 = jax.random.uniform(ks3[1], (4 * H3, D3), jnp.float32, -bound3, bound3)
    w_hh3 = jax.random.uniform(ks3[2], (4 * H3, H3), jnp.float32, -bound3, bound3)
    b_ih3 = jax.random.uniform(ks3[3], (4 * H3,), jnp.float32, -bound3, bound3)
    b_hh3 = jax.random.uniform(ks3[4], (4 * H3,), jnp.float32, -bound3, bound3)

    ref_out3, ref_states3 = _lstm_reference(x3, lengths3, w_ih3, w_hh3, b_ih3, b_hh3)
    fwd3 = jax.jit(functools.partial(
        attentive_rnn_forward, time_block=8, batch_block=8,
        mm_dtype=jnp.float32, return_hidden=True))
    out3, states3 = jax.block_until_ready(fwd3(x3, lengths3, w_ih3, w_hh3, b_ih3, b_hh3))
    assert out3.shape == (B3, H3) and states3.shape == (B3, L3, H3)
    assert jnp.allclose(out3, ref_out3, atol=1e-3, rtol=1e-3)
    assert jnp.allclose(states3, ref_states3, atol=1e-3, rtol=1e-3)

    print("KERNEL_OK")
</pallas_src>

<mosaic_0001>
module attributes {stable_mosaic.version = 11 : i64} {
  func.func @kernel(%arg0: i32, %arg1: i32, %arg2: memref<8x1xi32, #tpu.memory_space<vmem>>, %arg3: memref<4x8x16xf32, #tpu.memory_space<vmem>>, %arg4: memref<16x512xf32, #tpu.memory_space<vmem>>, %arg5: memref<128x512xf32, #tpu.memory_space<vmem>>, %arg6: memref<1x512xf32, #tpu.memory_space<vmem>>, %arg7: memref<4x8x128xf32, #tpu.memory_space<vmem>>, %arg8: memref<8x128xf32, #tpu.memory_space<vmem>>, %arg9: memref<4x8x512xf32, #tpu.memory_space<vmem>>, %arg10: memref<8x128xf32, #tpu.memory_space<vmem>>, %arg11: memref<8x128xf32, #tpu.memory_space<vmem>>) attributes {dimension_semantics = [#tpu.dimension_semantics<parallel>, #tpu.dimension_semantics<arbitrary>], iteration_bounds = array<i64: 1, 2>, scalar_prefetch = 0 : i64, scratch_operands = 3 : i64, tpu.core_type = #tpu.core_type<tc>, window_params = [{transform_indices = @transform_0, window_bounds = array<i64: 8, 1>}, {transform_indices = @transform_1, window_bounds = array<i64: 4, 8, 16>}, {pipeline_mode = #tpu.pipeline_mode<synchronous>, transform_indices = @transform_2, window_bounds = array<i64: 16, 512>}, {pipeline_mode = #tpu.pipeline_mode<synchronous>, transform_indices = @transform_3, window_bounds = array<i64: 128, 512>}, {pipeline_mode = #tpu.pipeline_mode<synchronous>, transform_indices = @transform_4, window_bounds = array<i64: 1, 512>}, {transform_indices = @transform_5, window_bounds = array<i64: 4, 8, 128>}, {transform_indices = @transform_6, window_bounds = array<i64: 8, 128>}]} {
    %c0_i32 = arith.constant 0 : i32
    %0 = arith.cmpi eq, %arg1, %c0_i32 : i32
    %1 = arith.extui %0 : i1 to i32
    %c0_i32_0 = arith.constant 0 : i32
    %2 = arith.cmpi ne, %1, %c0_i32_0 : i32
    scf.if %2 {
      %cst_92 = arith.constant 0.000000e+00 : f32
      %233 = vector.broadcast %cst_92 : f32 to vector<8x128xf32>
      %c0_93 = arith.constant 0 : index
      %c0_94 = arith.constant 0 : index
      %234 = vector.load %arg10[%c0_93, %c0_94] : memref<8x128xf32, #tpu.memory_space<vmem>>, vector<8x128xf32>
      tpu.vector_store %arg10[%c0_93, %c0_94], %233 {strides = array<i32>} : memref<8x128xf32, #tpu.memory_space<vmem>>, vector<8x128xf32>,
      %cst_95 = arith.constant 0.000000e+00 : f32
      %235 = vector.broadcast %cst_95 : f32 to vector<8x128xf32>
      %c0_96 = arith.constant 0 : index
      %c0_97 = arith.constant 0 : index
      %236 = vector.load %arg11[%c0_96, %c0_97] : memref<8x128xf32, #tpu.memory_space<vmem>>, vector<8x128xf32>
      tpu.vector_store %arg11[%c0_96, %c0_97], %235 {strides = array<i32>} : memref<8x128xf32, #tpu.memory_space<vmem>>, vector<8x128xf32>,
      %cst_98 = arith.constant 0.000000e+00 : f32
      %237 = vector.broadcast %cst_98 : f32 to vector<8x128xf32>
      %c0_99 = arith.constant 0 : index
      %c0_100 = arith.constant 0 : index
      %238 = vector.load %arg8[%c0_99, %c0_100] : memref<8x128xf32, #tpu.memory_space<vmem>>, vector<8x128xf32>
      tpu.vector_store %arg8[%c0_99, %c0_100], %237 {strides = array<i32>} : memref<8x128xf32, #tpu.memory_space<vmem>>, vector<8x128xf32>,
    } else {
    }
    %c0 = arith.constant 0 : index
    %c0_1 = arith.constant 0 : index
    %c0_2 = arith.constant 0 : index
    %3 = vector.load %arg3[%c0, %c0_1, %c0_2] : memref<4x8x16xf32, #tpu.memory_space<vmem>>, vector<4x8x16xf32>
    %4 = vector.shape_cast %3 : vector<4x8x16xf32> to vector<32x16xf32>
    %c0_3 = arith.constant 0 : index
    %c0_4 = arith.constant 0 : index
    %5 = vector.load %arg4[%c0_3, %c0_4] : memref<16x512xf32, #tpu.memory_space<vmem>>, vector<16x512xf32>
    %cst = arith.constant dense<0.000000e+00> : vector<32x512xf32>
    %6 = tpu.matmul %4, %5, %cst {dimension_numbers = #tpu.dot_dimension_numbers<[1], [0], [0], [1], [0, 0, 1, 1], [], []>} : vector<32x16xf32>, vector<16x512xf32>, vector<32x512xf32> -> vector<32x512xf32>
    %c0_5 = arith.constant 0 : index
    %c0_6 = arith.constant 0 : index
    %7 = vector.load %arg6[%c0_5, %c0_6] : memref<1x512xf32, #tpu.memory_space<vmem>>, vector<1x512xf32>
    %8 = vector.broadcast %7 : vector<1x512xf32> to vector<32x512xf32>
    %9 = arith.addf %6, %8 : vector<32x512xf32>
    %10 = vector.shape_cast %9 : vector<32x512xf32> to vector<4x8x512xf32>
    %c0_7 = arith.constant 0 : index
    %c0_8 = arith.constant 0 : index
    %c0_9 = arith.constant 0 : index
    %11 = vector.load %arg9[%c0_7, %c0_8, %c0_9] : memref<4x8x512xf32, #tpu.memory_space<vmem>>, vector<4x8x512xf32>
    tpu.vector_store %arg9[%c0_7, %c0_8, %c0_9], %10 {strides = array<i32>} : memref<4x8x512xf32, #tpu.memory_space<vmem>>, vector<4x8x512xf32>,
    %c0_10 = arith.constant 0 : index
    %c0_11 = arith.constant 0 : index
    %12 = vector.load %arg5[%c0_10, %c0_11] : memref<128x512xf32, #tpu.memory_space<vmem>>, vector<128x512xf32>
    %c0_12 = arith.constant 0 : index
    %c0_13 = arith.constant 0 : index
    %13 = vector.load %arg2[%c0_12, %c0_13] : memref<8x1xi32, #tpu.memory_space<vmem>>, vector<8x1xi32>
    %c4_i32 = arith.constant 4 : i32
    %14 = arith.muli %arg1, %c4_i32 : i32
    %c0_14 = arith.constant 0 : index
    %c0_15 = arith.constant 0 : index
    %15 = vector.load %arg10[%c0_14, %c0_15] : memref<8x128xf32, #tpu.memory_space<vmem>>, vector<8x128xf32>
    %c0_16 = arith.constant 0 : index
    %c0_17 = arith.constant 0 : index
    %16 = vector.load %arg11[%c0_16, %c0_17] : memref<8x128xf32, #tpu.memory_space<vmem>>, vector<8x128xf32>
    %c0_18 = arith.constant 0 : index
    %c0_19 = arith.constant 0 : index
    %17 = vector.load %arg8[%c0_18, %c0_19] : memref<8x128xf32, #tpu.memory_space<vmem>>, vector<8x128xf32>
    %c0_i32_20 = arith.constant 0 : i32
    %18 = arith.index_cast %c0_i32_20 : i32 to index
    %c0_21 = arith.constant 0 : index
    %c0_22 = arith.constant 0 : index
    %19 = vector.load %arg9[%18, %c0_21, %c0_22] : memref<4x8x512xf32, #tpu.memory_space<vmem>>, vector<1x8x512xf32>
    %20 = vector.shape_cast %19 : vector<1x8x512xf32> to vector<8x512xf32>
    %cst_23 = arith.constant dense<0.000000e+00> : vector<8x512xf32>
    %21 = tpu.matmul %15, %12, %cst_23 {dimension_numbers = #tpu.dot_dimension_numbers<[1], [0], [0], [1], [0, 0, 1, 1], [], []>} : vector<8x128xf32>, vector<128x512xf32>, vector<8x512xf32> -> vector<8x512xf32>
    %22 = arith.addf %20, %21 : vector<8x512xf32>
    %23 = vector.extract_strided_slice %22 {offsets = [0, 0], sizes = [8, 128], strides = [1, 1]} : vector<8x512xf32> to vector<8x128xf32>
    %cst_24 = arith.constant 5.000000e-01 : f32
    %24 = vector.broadcast %cst_24 : f32 to vector<8x128xf32>
    %25 = arith.mulf %24, %23 : vector<8x128xf32>
    %26 = math.tanh %25 : vector<8x128xf32>
    %cst_25 = arith.constant 5.000000e-01 : f32
    %27 = vector.broadcast %cst_25 : f32 to vector<8x128xf32>
    %28 = arith.mulf %27, %26 : vector<8x128xf32>
    %cst_26 = arith.constant 5.000000e-01 : f32
    %29 = vector.broadcast %cst_26 : f32 to vector<8x128xf32>
    %30 = arith.addf %28, %29 : vector<8x128xf32>
    %31 = vector.extract_strided_slice %22 {offsets = [0, 128], sizes = [8, 128], strides = [1, 1]} : vector<8x512xf32> to vector<8x128xf32>
    %cst_27 = arith.constant 5.000000e-01 : f32
    %32 = vector.broadcast %cst_27 : f32 to vector<8x128xf32>
    %33 = arith.mulf %32, %31 : vector<8x128xf32>
    %34 = math.tanh %33 : vector<8x128xf32>
    %cst_28 = arith.constant 5.000000e-01 : f32
    %35 = vector.broadcast %cst_28 : f32 to vector<8x128xf32>
    %36 = arith.mulf %35, %34 : vector<8x128xf32>
    %cst_29 = arith.constant 5.000000e-01 : f32
    %37 = vector.broadcast %cst_29 : f32 to vector<8x128xf32>
    %38 = arith.addf %36, %37 : vector<8x128xf32>
    %39 = vector.extract_strided_slice %22 {offsets = [0, 256], sizes = [8, 128], strides = [1, 1]} : vector<8x512xf32> to vector<8x128xf32>
    %40 = math.tanh %39 : vector<8x128xf32>
    %41 = vector.extract_strided_slice %22 {offsets = [0, 384], sizes = [8, 128], strides = [1, 1]} : vector<8x512xf32> to vector<8x128xf32>
    %cst_30 = arith.constant 5.000000e-01 : f32
    %42 = vector.broadcast %cst_30 : f32 to vector<8x128xf32>
    %43 = arith.mulf %42, %41 : vector<8x128xf32>
    %44 = math.tanh %43 : vector<8x128xf32>
    %cst_31 = arith.constant 5.000000e-01 : f32
    %45 = vector.broadcast %cst_31 : f32 to vector<8x128xf32>
    %46 = arith.mulf %45, %44 : vector<8x128xf32>
    %cst_32 = arith.constant 5.000000e-01 : f32
    %47 = vector.broadcast %cst_32 : f32 to vector<8x128xf32>
    %48 = arith.addf %46, %47 : vector<8x128xf32>
    %49 = arith.mulf %38, %16 : vector<8x128xf32>
    %50 = arith.mulf %30, %40 : vector<8x128xf32>
    %51 = arith.addf %49, %50 : vector<8x128xf32>
    %52 = math.tanh %51 : vector<8x128xf32>
    %53 = arith.mulf %48, %52 : vector<8x128xf32>
    %54 = arith.addi %14, %c0_i32_20 : i32
    %55 = vector.broadcast %54 : i32 to vector<8x1xi32>
    %56 = arith.cmpi sgt, %13, %55 : vector<8x1xi32>
    %c1_i32 = arith.constant 1 : i32
    %57 = arith.addi %54, %c1_i32 : i32
    %58 = vector.broadcast %57 : i32 to vector<8x1xi32>
    %59 = arith.cmpi eq, %13, %58 : vector<8x1xi32>
    %cst_33 = arith.constant 0.000000e+00 : f32
    %60 = vector.shape_cast %56 : vector<8x1xi1> to vector<8x1xi1>
    %61 = vector.broadcast %60 : vector<8x1xi1> to vector<8x128xi1>
    %62 = vector.broadcast %cst_33 : f32 to vector<8x128xf32>
    %63 = arith.select %61, %53, %62 : vector<8x128xi1>, vector<8x128xf32>
    %64 = arith.index_cast %c0_i32_20 : i32 to index
    %c0_34 = arith.constant 0 : index
    %c0_35 = arith.constant 0 : index
    %65 = vector.load %arg7[%64, %c0_34, %c0_35] : memref<4x8x128xf32, #tpu.memory_space<vmem>>, vector<1x8x128xf32>
    %66 = vector.shape_cast %65 : vector<1x8x128xf32> to vector<8x128xf32>
    %67 = vector.shape_cast %63 : vector<8x128xf32> to vector<1x8x128xf32>
    tpu.vector_store %arg7[%64, %c0_34, %c0_35], %67 {strides = array<i32>} : memref<4x8x128xf32, #tpu.memory_space<vmem>>, vector<1x8x128xf32>,
    %68 = vector.shape_cast %59 : vector<8x1xi1> to vector<8x1xi1>
    %69 = vector.broadcast %68 : vector<8x1xi1> to vector<8x128xi1>
    %70 = arith.select %69, %53, %17 : vector<8x128xi1>, vector<8x128xf32>
    %c1_i32_36 = arith.constant 1 : i32
    %71 = arith.index_cast %c1_i32_36 : i32 to index
    %c0_37 = arith.constant 0 : index
    %c0_38 = arith.constant 0 : index
    %72 = vector.load %arg9[%71, %c0_37, %c0_38] : memref<4x8x512xf32, #tpu.memory_space<vmem>>, vector<1x8x512xf32>
    %73 = vector.shape_cast %72 : vector<1x8x512xf32> to vector<8x512xf32>
    %cst_39 = arith.constant dense<0.000000e+00> : vector<8x512xf32>
    %74 = tpu.matmul %53, %12, %cst_39 {dimension_numbers = #tpu.dot_dimension_numbers<[1], [0], [0], [1], [0, 0, 1, 1], [], []>} : vector<8x128xf32>, vector<128x512xf32>, vector<8x512xf32> -> vector<8x512xf32>
    %75 = arith.addf %73, %74 : vector<8x512xf32>
    %76 = vector.extract_strided_slice %75 {offsets = [0, 0], sizes = [8, 128], strides = [1, 1]} : vector<8x512xf32> to vector<8x128xf32>
    %cst_40 = arith.constant 5.000000e-01 : f32
    %77 = vector.broadcast %cst_40 : f32 to vector<8x128xf32>
    %78 = arith.mulf %77, %76 : vector<8x128xf32>
    %79 = math.tanh %78 : vector<8x128xf32>
    %cst_41 = arith.constant 5.000000e-01 : f32
    %80 = vector.broadcast %cst_41 : f32 to vector<8x128xf32>
    %81 = arith.mulf %80, %79 : vector<8x128xf32>
    %cst_42 = arith.constant 5.000000e-01 : f32
    %82 = vector.broadcast %cst_42 : f32 to vector<8x128xf32>
    %83 = arith.addf %81, %82 : vector<8x128xf32>
    %84 = vector.extract_strided_slice %75 {offsets = [0, 128], sizes = [8, 128], strides = [1, 1]} : vector<8x512xf32> to vector<8x128xf32>
    %cst_43 = arith.constant 5.000000e-01 : f32
    %85 = vector.broadcast %cst_43 : f32 to vector<8x128xf32>
    %86 = arith.mulf %85, %84 : vector<8x128xf32>
    %87 = math.tanh %86 : vector<8x128xf32>
    %cst_44 = arith.constant 5.000000e-01 : f32
    %88 = vector.broadcast %cst_44 : f32 to vector<8x128xf32>
    %89 = arith.mulf %88, %87 : vector<8x128xf32>
    %cst_45 = arith.constant 5.000000e-01 : f32
    %90 = vector.broadcast %cst_45 : f32 to vector<8x128xf32>
    %91 = arith.addf %89, %90 : vector<8x128xf32>
    %92 = vector.extract_strided_slice %75 {offsets = [0, 256], sizes = [8, 128], strides = [1, 1]} : vector<8x512xf32> to vector<8x128xf32>
    %93 = math.tanh %92 : vector<8x128xf32>
    %94 = vector.extract_strided_slice %75 {offsets = [0, 384], sizes = [8, 128], strides = [1, 1]} : vector<8x512xf32> to vector<8x128xf32>
    %cst_46 = arith.constant 5.000000e-01 : f32
    %95 = vector.broadcast %cst_46 : f32 to vector<8x128xf32>
    %96 = arith.mulf %95, %94 : vector<8x128xf32>
    %97 = math.tanh %96 : vector<8x128xf32>
    %cst_47 = arith.constant 5.000000e-01 : f32
    %98 = vector.broadcast %cst_47 : f32 to vector<8x128xf32>
    %99 = arith.mulf %98, %97 : vector<8x128xf32>
    %cst_48 = arith.constant 5.000000e-01 : f32
    %100 = vector.broadcast %cst_48 : f32 to vector<8x128xf32>
    %101 = arith.addf %99, %100 : vector<8x128xf32>
    %102 = arith.mulf %91, %51 : vector<8x128xf32>
    %103 = arith.mulf %83, %93 : vector<8x128xf32>
    %104 = arith.addf %102, %103 : vector<8x128xf32>
    %105 = math.tanh %104 : vector<8x128xf32>
    %106 = arith.mulf %101, %105 : vector<8x128xf32>
    %107 = arith.addi %14, %c1_i32_36 : i32
    %108 = vector.broadcast %107 : i32 to vector<8x1xi32>
    %109 = arith.cmpi sgt, %13, %108 : vector<8x1xi32>
    %c1_i32_49 = arith.constant 1 : i32
    %110 = arith.addi %107, %c1_i32_49 : i32
    %111 = vector.broadcast %110 : i32 to vector<8x1xi32>
    %112 = arith.cmpi eq, %13, %111 : vector<8x1xi32>
    %cst_50 = arith.constant 0.000000e+00 : f32
    %113 = vector.shape_cast %109 : vector<8x1xi1> to vector<8x1xi1>
    %114 = vector.broadcast %113 : vector<8x1xi1> to vector<8x128xi1>
    %115 = vector.broadcast %cst_50 : f32 to vector<8x128xf32>
    %116 = arith.select %114, %106, %115 : vector<8x128xi1>, vector<8x128xf32>
    %117 = arith.index_cast %c1_i32_36 : i32 to index
    %c0_51 = arith.constant 0 : index
    %c0_52 = arith.constant 0 : index
    %118 = vector.load %arg7[%117, %c0_51, %c0_52] : memref<4x8x128xf32, #tpu.memory_space<vmem>>, vector<1x8x128xf32>
    %119 = vector.shape_cast %118 : vector<1x8x128xf32> to vector<8x128xf32>
    %120 = vector.shape_cast %116 : vector<8x128xf32> to vector<1x8x128xf32>
    tpu.vector_store %arg7[%117, %c0_51, %c0_52], %120 {strides = array<i32>} : memref<4x8x128xf32, #tpu.memory_space<vmem>>, vector<1x8x128xf32>,
    %121 = vector.shape_cast %112 : vector<8x1xi1> to vector<8x1xi1>
    %122 = vector.broadcast %121 : vector<8x1xi1> to vector<8x128xi1>
    %123 = arith.select %122, %106, %70 : vector<8x128xi1>, vector<8x128xf32>
    %c2_i32 = arith.constant 2 : i32
    %124 = arith.index_cast %c2_i32 : i32 to index
    %c0_53 = arith.constant 0 : index
    %c0_54 = arith.constant 0 : index
    %125 = vector.load %arg9[%124, %c0_53, %c0_54] : memref<4x8x512xf32, #tpu.memory_space<vmem>>, vector<1x8x512xf32>
    %126 = vector.shape_cast %125 : vector<1x8x512xf32> to vector<8x512xf32>
    %cst_55 = arith.constant dense<0.000000e+00> : vector<8x512xf32>
    %127 = tpu.matmul %106, %12, %cst_55 {dimension_numbers = #tpu.dot_dimension_numbers<[1], [0], [0], [1], [0, 0, 1, 1], [], []>} : vector<8x128xf32>, vector<128x512xf32>, vector<8x512xf32> -> vector<8x512xf32>
    %128 = arith.addf %126, %127 : vector<8x512xf32>
    %129 = vector.extract_strided_slice %128 {offsets = [0, 0], sizes = [8, 128], strides = [1, 1]} : vector<8x512xf32> to vector<8x128xf32>
    %cst_56 = arith.constant 5.000000e-01 : f32
    %130 = vector.broadcast %cst_56 : f32 to vector<8x128xf32>
    %131 = arith.mulf %130, %129 : vector<8x128xf32>
    %132 = math.tanh %131 : vector<8x128xf32>
    %cst_57 = arith.constant 5.000000e-01 : f32
    %133 = vector.broadcast %cst_57 : f32 to vector<8x128xf32>
    %134 = arith.mulf %133, %132 : vector<8x128xf32>
    %cst_58 = arith.constant 5.000000e-01 : f32
    %135 = vector.broadcast %cst_58 : f32 to vector<8x128xf32>
    %136 = arith.addf %134, %135 : vector<8x128xf32>
    %137 = vector.extract_strided_slice %128 {offsets = [0, 128], sizes = [8, 128], strides = [1, 1]} : vector<8x512xf32> to vector<8x128xf32>
    %cst_59 = arith.constant 5.000000e-01 : f32
    %138 = vector.broadcast %cst_59 : f32 to vector<8x128xf32>
    %139 = arith.mulf %138, %137 : vector<8x128xf32>
    %140 = math.tanh %139 : vector<8x128xf32>
    %cst_60 = arith.constant 5.000000e-01 : f32
    %141 = vector.broadcast %cst_60 : f32 to vector<8x128xf32>
    %142 = arith.mulf %141, %140 : vector<8x128xf32>
    %cst_61 = arith.constant 5.000000e-01 : f32
    %143 = vector.broadcast %cst_61 : f32 to vector<8x128xf32>
    %144 = arith.addf %142, %143 : vector<8x128xf32>
    %145 = vector.extract_strided_slice %128 {offsets = [0, 256], sizes = [8, 128], strides = [1, 1]} : vector<8x512xf32> to vector<8x128xf32>
    %146 = math.tanh %145 : vector<8x128xf32>
    %147 = vector.extract_strided_slice %128 {offsets = [0, 384], sizes = [8, 128], strides = [1, 1]} : vector<8x512xf32> to vector<8x128xf32>
    %cst_62 = arith.constant 5.000000e-01 : f32
    %148 = vector.broadcast %cst_62 : f32 to vector<8x128xf32>
    %149 = arith.mulf %148, %147 : vector<8x128xf32>
    %150 = math.tanh %149 : vector<8x128xf32>
    %cst_63 = arith.constant 5.000000e-01 : f32
    %151 = vector.broadcast %cst_63 : f32 to vector<8x128xf32>
    %152 = arith.mulf %151, %150 : vector<8x128xf32>
    %cst_64 = arith.constant 5.000000e-01 : f32
    %153 = vector.broadcast %cst_64 : f32 to vector<8x128xf32>
    %154 = arith.addf %152, %153 : vector<8x128xf32>
    %155 = arith.mulf %144, %104 : vector<8x128xf32>
    %156 = arith.mulf %136, %146 : vector<8x128xf32>
    %157 = arith.addf %155, %156 : vector<8x128xf32>
    %158 = math.tanh %157 : vector<8x128xf32>
    %159 = arith.mulf %154, %158 : vector<8x128xf32>
    %160 = arith.addi %14, %c2_i32 : i32
    %161 = vector.broadcast %160 : i32 to vector<8x1xi32>
    %162 = arith.cmpi sgt, %13, %161 : vector<8x1xi32>
    %c1_i32_65 = arith.constant 1 : i32
    %163 = arith.addi %160, %c1_i32_65 : i32
    %164 = vector.broadcast %163 : i32 to vector<8x1xi32>
    %165 = arith.cmpi eq, %13, %164 : vector<8x1xi32>
    %cst_66 = arith.constant 0.000000e+00 : f32
    %166 = vector.shape_cast %162 : vector<8x1xi1> to vector<8x1xi1>
    %167 = vector.broadcast %166 : vector<8x1xi1> to vector<8x128xi1>
    %168 = vector.broadcast %cst_66 : f32 to vector<8x128xf32>
    %169 = arith.select %167, %159, %168 : vector<8x128xi1>, vector<8x128xf32>
    %170 = arith.index_cast %c2_i32 : i32 to index
    %c0_67 = arith.constant 0 : index
    %c0_68 = arith.constant 0 : index
    %171 = vector.load %arg7[%170, %c0_67, %c0_68] : memref<4x8x128xf32, #tpu.memory_space<vmem>>, vector<1x8x128xf32>
    %172 = vector.shape_cast %171 : vector<1x8x128xf32> to vector<8x128xf32>
    %173 = vector.shape_cast %169 : vector<8x128xf32> to vector<1x8x128xf32>
    tpu.vector_store %arg7[%170, %c0_67, %c0_68], %173 {strides = array<i32>} : memref<4x8x128xf32, #tpu.memory_space<vmem>>, vector<1x8x128xf32>,
    %174 = vector.shape_cast %165 : vector<8x1xi1> to vector<8x1xi1>
    %175 = vector.broadcast %174 : vector<8x1xi1> to vector<8x128xi1>
    %176 = arith.select %175, %159, %123 : vector<8x128xi1>, vector<8x128xf32>
    %c3_i32 = arith.constant 3 : i32
    %177 = arith.index_cast %c3_i32 : i32 to index
    %c0_69 = arith.constant 0 : index
    %c0_70 = arith.constant 0 : index
    %178 = vector.load %arg9[%177, %c0_69, %c0_70] : memref<4x8x512xf32, #tpu.memory_space<vmem>>, vector<1x8x512xf32>
    %179 = vector.shape_cast %178 : vector<1x8x512xf32> to vector<8x512xf32>
    %cst_71 = arith.constant dense<0.000000e+00> : vector<8x512xf32>
    %180 = tpu.matmul %159, %12, %cst_71 {dimension_numbers = #tpu.dot_dimension_numbers<[1], [0], [0], [1], [0, 0, 1, 1], [], []>} : vector<8x128xf32>, vector<128x512xf32>, vector<8x512xf32> -> vector<8x512xf32>
    %181 = arith.addf %179, %180 : vector<8x512xf32>
    %182 = vector.extract_strided_slice %181 {offsets = [0, 0], sizes = [8, 128], strides = [1, 1]} : vector<8x512xf32> to vector<8x128xf32>
    %cst_72 = arith.constant 5.000000e-01 : f32
    %183 = vector.broadcast %cst_72 : f32 to vector<8x128xf32>
    %184 = arith.mulf %183, %182 : vector<8x128xf32>
    %185 = math.tanh %184 : vector<8x128xf32>
    %cst_73 = arith.constant 5.000000e-01 : f32
    %186 = vector.broadcast %cst_73 : f32 to vector<8x128xf32>
    %187 = arith.mulf %186, %185 : vector<8x128xf32>
    %cst_74 = arith.constant 5.000000e-01 : f32
    %188 = vector.broadcast %cst_74 : f32 to vector<8x128xf32>
    %189 = arith.addf %187, %188 : vector<8x128xf32>
    %190 = vector.extract_strided_slice %181 {offsets = [0, 128], sizes = [8, 128], strides = [1, 1]} : vector<8x512xf32> to vector<8x128xf32>
    %cst_75 = arith.constant 5.000000e-01 : f32
    %191 = vector.broadcast %cst_75 : f32 to vector<8x128xf32>
    %192 = arith.mulf %191, %190 : vector<8x128xf32>
    %193 = math.tanh %192 : vector<8x128xf32>
    %cst_76 = arith.constant 5.000000e-01 : f32
    %194 = vector.broadcast %cst_76 : f32 to vector<8x128xf32>
    %195 = arith.mulf %194, %193 : vector<8x128xf32>
    %cst_77 = arith.constant 5.000000e-01 : f32
    %196 = vector.broadcast %cst_77 : f32 to vector<8x128xf32>
    %197 = arith.addf %195, %196 : vector<8x128xf32>
    %198 = vector.extract_strided_slice %181 {offsets = [0, 256], sizes = [8, 128], strides = [1, 1]} : vector<8x512xf32> to vector<8x128xf32>
    %199 = math.tanh %198 : vector<8x128xf32>
    %200 = vector.extract_strided_slice %181 {offsets = [0, 384], sizes = [8, 128], strides = [1, 1]} : vector<8x512xf32> to vector<8x128xf32>
    %cst_78 = arith.constant 5.000000e-01 : f32
    %201 = vector.broadcast %cst_78 : f32 to vector<8x128xf32>
    %202 = arith.mulf %201, %200 : vector<8x128xf32>
    %203 = math.tanh %202 : vector<8x128xf32>
    %cst_79 = arith.constant 5.000000e-01 : f32
    %204 = vector.broadcast %cst_79 : f32 to vector<8x128xf32>
    %205 = arith.mulf %204, %203 : vector<8x128xf32>
    %cst_80 = arith.constant 5.000000e-01 : f32
    %206 = vector.broadcast %cst_80 : f32 to vector<8x128xf32>
    %207 = arith.addf %205, %206 : vector<8x128xf32>
    %208 = arith.mulf %197, %157 : vector<8x128xf32>
    %209 = arith.mulf %189, %199 : vector<8x128xf32>
    %210 = arith.addf %208, %209 : vector<8x128xf32>
    %211 = math.tanh %210 : vector<8x128xf32>
    %212 = arith.mulf %207, %211 : vector<8x128xf32>
    %213 = arith.addi %14, %c3_i32 : i32
    %214 = vector.broadcast %213 : i32 to vector<8x1xi32>
    %215 = arith.cmpi sgt, %13, %214 : vector<8x1xi32>
    %c1_i32_81 = arith.constant 1 : i32
    %216 = arith.addi %213, %c1_i32_81 : i32
    %217 = vector.broadcast %216 : i32 to vector<8x1xi32>
    %218 = arith.cmpi eq, %13, %217 : vector<8x1xi32>
    %cst_82 = arith.constant 0.000000e+00 : f32
    %219 = vector.shape_cast %215 : vector<8x1xi1> to vector<8x1xi1>
    %220 = vector.broadcast %219 : vector<8x1xi1> to vector<8x128xi1>
    %221 = vector.broadcast %cst_82 : f32 to vector<8x128xf32>
    %222 = arith.select %220, %212, %221 : vector<8x128xi1>, vector<8x128xf32>
    %223 = arith.index_cast %c3_i32 : i32 to index
    %c0_83 = arith.constant 0 : index
    %c0_84 = arith.constant 0 : index
    %224 = vector.load %arg7[%223, %c0_83, %c0_84] : memref<4x8x128xf32, #tpu.memory_space<vmem>>, vector<1x8x128xf32>
    %225 = vector.shape_cast %224 : vector<1x8x128xf32> to vector<8x128xf32>
    %226 = vector.shape_cast %222 : vector<8x128xf32> to vector<1x8x128xf32>
    tpu.vector_store %arg7[%223, %c0_83, %c0_84], %226 {strides = array<i32>} : memref<4x8x128xf32, #tpu.memory_space<vmem>>, vector<1x8x128xf32>,
    %227 = vector.shape_cast %218 : vector<8x1xi1> to vector<8x1xi1>
    %228 = vector.broadcast %227 : vector<8x1xi1> to vector<8x128xi1>
    %229 = arith.select %228, %212, %176 : vector<8x128xi1>, vector<8x128xf32>
    %c4_i32_85 = arith.constant 4 : i32
    %c0_86 = arith.constant 0 : index
    %c0_87 = arith.constant 0 : index
    %230 = vector.load %arg10[%c0_86, %c0_87] : memref<8x128xf32, #tpu.memory_space<vmem>>, vector<8x128xf32>
    tpu.vector_store %arg10[%c0_86, %c0_87], %212 {strides = array<i32>} : memref<8x128xf32, #tpu.memory_space<vmem>>, vector<8x128xf32>,
    %c0_88 = arith.constant 0 : index
    %c0_89 = arith.constant 0 : index
    %231 = vector.load %arg11[%c0_88, %c0_89] : memref<8x128xf32, #tpu.memory_space<vmem>>, vector<8x128xf32>
    tpu.vector_store %arg11[%c0_88, %c0_89], %210 {strides = array<i32>} : memref<8x128xf32, #tpu.memory_space<vmem>>, vector<8x128xf32>,
    %c0_90 = arith.constant 0 : index
    %c0_91 = arith.constant 0 : index
    %232 = vector.load %arg8[%c0_90, %c0_91] : memref<8x128xf32, #tpu.memory_space<vmem>>, vector<8x128xf32>
    tpu.vector_store %arg8[%c0_90, %c0_91], %229 {strides = array<i32>} : memref<8x128xf32, #tpu.memory_space<vmem>>, vector<8x128xf32>,
    return
  }
  func.func @transform_0(%arg0: i32, %arg1: i32) -> (i32, i32) {
    %c0_i32 = arith.constant 0 : i32
    %c0_i32_0 = arith.constant 0 : i32
    return %arg0, %c0_i32 : i32, i32
  }
  func.func @transform_1(%arg0: i32, %arg1: i32) -> (i32, i32, i32) {
    %c0_i32 = arith.constant 0 : i32
    %c0_i32_0 = arith.constant 0 : i32
    return %arg1, %arg0, %c0_i32 : i32, i32, i32
  }
  func.func @transform_2(%arg0: i32, %arg1: i32) -> (i32, i32) {
    %c0_i32 = arith.constant 0 : i32
    %c0_i32_0 = arith.constant 0 : i32
    %c0_i32_1 = arith.constant 0 : i32
    return %c0_i32, %c0_i32_0 : i32, i32
  }
  func.func @transform_3(%arg0: i32, %arg1: i32) -> (i32, i32) {
    %c0_i32 = arith.constant 0 : i32
    %c0_i32_0 = arith.constant 0 : i32
    %c0_i32_1 = arith.constant 0 : i32
    return %c0_i32, %c0_i32_0 : i32, i32
  }
  func.func @transform_4(%arg0: i32, %arg1: i32) -> (i32, i32) {
    %c0_i32 = arith.constant 0 : i32
    %c0_i32_0 = arith.constant 0 : i32
    %c0_i32_1 = arith.constant 0 : i32
    return %c0_i32, %c0_i32_0 : i32, i32
  }
  func.func @transform_5(%arg0: i32, %arg1: i32) -> (i32, i32, i32) {
    %c0_i32 = arith.constant 0 : i32
    %c0_i32_0 = arith.constant 0 : i32
    return %arg1, %arg0, %c0_i32 : i32, i32, i32
  }
  func.func @transform_6(%arg0: i32, %arg1: i32) -> (i32, i32) {
    %c0_i32 = arith.constant 0 : i32
    %c0_i32_0 = arith.constant 0 : i32
    return %arg0, %c0_i32 : i32, i32
  }
}

</mosaic_0001>

<llo_original>
// kernel: attentive_rnn_forward.1
$region0: #{attentive_rnn_forward.1}
  #allocation0 [shape = 'u32[]', space=smem, size = 0x4, offset = 0x4, fixed_abs, tag = 'smem constant byte address 0x4 - core index']
  #allocation1 [shape = 'u32[144,128]{1,0:T(1,128)}', space=vmem, size = 0x12000, scoped, tag = 'internal scratch']
  #allocation2 [shape = 'f32[4,8,512]{2,1,0:T(8,128)}', space=vmem, size = 0x10000, scoped, tag = 'scratch operand']
  #allocation3 [shape = 'f32[8,128]{1,0:T(8,128)}', space=vmem, size = 0x1000, scoped, tag = 'scratch operand']
  #allocation4 [shape = 'f32[8,128]{1,0:T(8,128)}', space=vmem, size = 0x1000, scoped, tag = 'scratch operand']
  %s0 = inlined_call_operand.vmem [shape: s32[8,1], index: 0, kind: input, shape index: {}]
  %s1 = inlined_call_operand.vmem [shape: f32[8,8,16], index: 1, kind: input, shape index: {}]
  %s2 = inlined_call_operand.vmem [shape: f32[16,512], index: 2, kind: input, shape index: {}]
  %s3 = inlined_call_operand.vmem [shape: f32[128,512], index: 3, kind: input, shape index: {}]
  %s4 = inlined_call_operand.vmem [shape: f32[1,512], index: 4, kind: input, shape index: {}]
  %s5 = inlined_call_operand.vmem [shape: f32[8,8,128], index: 5, kind: output, shape index: {0}]
  %s6 = inlined_call_operand.vmem [shape: f32[8,128], index: 6, kind: output, shape index: {1}]
  %7 = xla_tuple %s5, %s6
  %s8 = sld [smem:[#allocation0]]
  $region65: #{attentive_rnn_forward.1} parent=0
    _
  %s10 = ssub.s32 1, %s8
  %s11 = scalar_select 0, %s10, %s8
  loop: start=0, step=1, limit=4
  $region2: #{attentive_rnn_forward.1} parent=0 // loop_pre_header
    _
  $region3: #{attentive_rnn_forward.1} parent=0 // loop_header
    %s13 = sphi 0, %s17
    %p14 = scmp.ge.s32.totalorder %s13, 4
    %s20 = sphi 0, %s32
    %s21 = sphi 0, %s28
    %s22 = sphi 0, %s20
    %s23 = sphi 0, %s21
    %s24 = sphi 0, %s22
    %s25 = sphi 0, %s23
    %s35 = sphi 0, %s37
    %s38 = sphi 0, %s35
    %s39 = sphi 0, %s38
    %s55 = sphi 0, %s39
    %s63 = sphi 0, %s65
    %s66 = sphi 0, %s63
    %s67 = sphi 0, %s66
    %s83 = sphi 0, %s67
    %s87 = sphi 0, %s87
    %s89 = sphi 0, %s87
    %s90 = sphi 0, %s89
    %s104 = sphi 0, %s90
    %s108 = sphi 0, %s108
    %s110 = sphi 0, %s108
    %s111 = sphi 0, %s110
    %s125 = sphi 0, %s111
    %s129 = sphi 0, %s129
    %s131 = sphi 0, %s129
    %s132 = sphi 0, %s131
    %s146 = sphi 0, %s132
    %s154 = sphi 0, %s156
    %s157 = sphi 0, %s154
    %s158 = sphi 0, %s157
    %s174 = sphi 0, %s158
    %s180 = sphi 0, %s182
    %s183 = sphi 0, %s180
    %s184 = sphi 0, %s183
    %s200 = sphi 0, %s184
  $region4: #{attentive_rnn_forward.1} parent=0 // loop_header_branch
    %16 = sbr.rel (%p14) target = $region8
  $region5: #{attentive_rnn_forward.1} parent=0 // loop_body
    %s18 = ssub.s32 %s13, 1
    %s19 = ssub.s32 %s13, 2
    %s26 = sadd.s32 1, %s21
    %p27 = scmp.ge.s32.totalorder %s26, 2
    %s28 = scalar_select %p27, 0, %s26
    %s29 = sadd.s32 1, %s20
    %s30 = scalar_select %p27, %s29, %s20
    %p31 = scmp.ge.s32.totalorder %s30, 1
    %s32 = scalar_select %p31, 0, %s30
    %s33 = ssub.s32 %s20, %s32
    %p34 = scmp.eq.s32.totalorder %s33, 0
    %s36 = sadd.s32 %s35, 1
    %s37 = scalar_select %p34, %s35, %s36
    %p40 = pneg %p34
    %p41 = scmp.eq.s32.totalorder %s13, 1
    %p42 = por %p40, %p41
    %p43 = scmp.ne.s32.totalorder %s35, %s38
    %p44 = scmp.eq.s32.totalorder %s13, 0
    %p45 = por %p43, %p44
    %p46 = scmp.ne.s32.totalorder %s35, %s38
    %p47 = scmp.eq.s32.totalorder %s18, 1
    %p48 = por %p46, %p47
    %p49 = scmp.ne.s32.totalorder %s38, %s39
    %p50 = scmp.eq.s32.totalorder %s18, 0
    %p51 = por %p49, %p50
    %p52 = scmp.ne.s32.totalorder %s38, %s39
    %p53 = scmp.eq.s32.totalorder %s19, 1
    %p54 = por %p52, %p53
    %p56 = scmp.ne.s32.totalorder %s39, %s55
    %p57 = scmp.eq.s32.totalorder %s19, 0
    %p58 = por %p56, %p57
    %s59 = ssub.s32 %s21, %s28
    %s60 = ssub.s32 %s20, %s32
    %s61 = sor.u32 %s59, %s60
    %p62 = scmp.eq.s32.totalorder %s61, 0
    %s64 = sadd.s32 %s63, 1
    %s65 = scalar_select %p62, %s63, %s64
    %p68 = pneg %p62
    %p69 = scmp.eq.s32.totalorder %s13, 1
    %p70 = por %p68, %p69
    %p71 = scmp.ne.s32.totalorder %s63, %s66
    %p72 = scmp.eq.s32.totalorder %s13, 0
    %p73 = por %p71, %p72
    %p74 = scmp.ne.s32.totalorder %s63, %s66
    %p75 = scmp.eq.s32.totalorder %s18, 1
    %p76 = por %p74, %p75
    %p77 = scmp.ne.s32.totalorder %s66, %s67
    %p78 = scmp.eq.s32.totalorder %s18, 0
    %p79 = por %p77, %p78
    %p80 = scmp.ne.s32.totalorder %s66, %s67
    %p81 = scmp.eq.s32.totalorder %s19, 1
    %p82 = por %p80, %p81
    %p84 = scmp.ne.s32.totalorder %s67, %s83
    %p85 = scmp.eq.s32.totalorder %s19, 0
    %p86 = por %p84, %p85
    %s88 = sadd.s32 %s87, 1
    %p91 = scmp.eq.s32.totalorder %s13, 1
    %p92 = scmp.ne.s32.totalorder %s87, %s89
    %p93 = scmp.eq.s32.totalorder %s13, 0
    %p94 = por %p92, %p93
    %p95 = scmp.ne.s32.totalorder %s87, %s89
    %p96 = scmp.eq.s32.totalorder %s18, 1
    %p97 = por %p95, %p96
    %p98 = scmp.ne.s32.totalorder %s89, %s90
    %p99 = scmp.eq.s32.totalorder %s18, 0
    %p100 = por %p98, %p99
    %p101 = scmp.ne.s32.totalorder %s89, %s90
    %p102 = scmp.eq.s32.totalorder %s19, 1
    %p103 = por %p101, %p102
    %p105 = scmp.ne.s32.totalorder %s90, %s104
    %p106 = scmp.eq.s32.totalorder %s19, 0
    %p107 = por %p105, %p106
    %s109 = sadd.s32 %s108, 1
    %p112 = scmp.eq.s32.totalorder %s13, 1
    %p113 = scmp.ne.s32.totalorder %s108, %s110
    %p114 = scmp.eq.s32.totalorder %s13, 0
    %p115 = por %p113, %p114
    %p116 = scmp.ne.s32.totalorder %s108, %s110
    %p117 = scmp.eq.s32.totalorder %s18, 1
    %p118 = por %p116, %p117
    %p119 = scmp.ne.s32.totalorder %s110, %s111
    %p120 = scmp.eq.s32.totalorder %s18, 0
    %p121 = por %p119, %p120
    %p122 = scmp.ne.s32.totalorder %s110, %s111
    %p123 = scmp.eq.s32.totalorder %s19, 1
    %p124 = por %p122, %p123
    %p126 = scmp.ne.s32.totalorder %s111, %s125
    %p127 = scmp.eq.s32.totalorder %s19, 0
    %p128 = por %p126, %p127
    %s130 = sadd.s32 %s129, 1
    %p133 = scmp.eq.s32.totalorder %s13, 1
    %p134 = scmp.ne.s32.totalorder %s129, %s131
    %p135 = scmp.eq.s32.totalorder %s13, 0
    %p136 = por %p134, %p135
    %p137 = scmp.ne.s32.totalorder %s129, %s131
    %p138 = scmp.eq.s32.totalorder %s18, 1
    %p139 = por %p137, %p138
    %p140 = scmp.ne.s32.totalorder %s131, %s132
    %p141 = scmp.eq.s32.totalorder %s18, 0
    %p142 = por %p140, %p141
    %p143 = scmp.ne.s32.totalorder %s131, %s132
    %p144 = scmp.eq.s32.totalorder %s19, 1
    %p145 = por %p143, %p144
    %p147 = scmp.ne.s32.totalorder %s132, %s146
    %p148 = scmp.eq.s32.totalorder %s19, 0
    %p149 = por %p147, %p148
    %s150 = ssub.s32 %s21, %s28
    %s151 = ssub.s32 %s20, %s32
    %s152 = sor.u32 %s150, %s151
    %p153 = scmp.eq.s32.totalorder %s152, 0
    %s155 = sadd.s32 %s154, 1
    %s156 = scalar_select %p153, %s154, %s155
    %p159 = pneg %p153
    %p160 = scmp.eq.s32.totalorder %s13, 1
    %p161 = por %p159, %p160
    %p162 = scmp.ne.s32.totalorder %s154, %s157
    %p163 = scmp.eq.s32.totalorder %s13, 0
    %p164 = por %p162, %p163
    %p165 = scmp.ne.s32.totalorder %s154, %s157
    %p166 = scmp.eq.s32.totalorder %s18, 1
    %p167 = por %p165, %p166
    %p168 = scmp.ne.s32.totalorder %s157, %s158
    %p169 = scmp.eq.s32.totalorder %s18, 0
    %p170 = por %p168, %p169
    %p171 = scmp.ne.s32.totalorder %s157, %s158
    %p172 = scmp.eq.s32.totalorder %s19, 1
    %p173 = por %p171, %p172
    %p175 = scmp.ne.s32.totalorder %s158, %s174
    %p176 = scmp.eq.s32.totalorder %s19, 0
    %p177 = por %p175, %p176
    %s178 = ssub.s32 %s20, %s32
    %p179 = scmp.eq.s32.totalorder %s178, 0
    %s181 = sadd.s32 %s180, 1
    %s182 = scalar_select %p179, %s180, %s181
    %p185 = pneg %p179
    %p186 = scmp.eq.s32.totalorder %s13, 1
    %p187 = por %p185, %p186
    %p188 = scmp.ne.s32.totalorder %s180, %s183
    %p189 = scmp.eq.s32.totalorder %s13, 0
    %p190 = por %p188, %p189
    %p191 = scmp.ne.s32.totalorder %s180, %s183
    %p192 = scmp.eq.s32.totalorder %s18, 1
    %p193 = por %p191, %p192
    %p194 = scmp.ne.s32.totalorder %s183, %s184
    %p195 = scmp.eq.s32.totalorder %s18, 0
    %p196 = por %p194, %p195
    %p197 = scmp.ne.s32.totalorder %s183, %s184
    %p198 = scmp.eq.s32.totalorder %s19, 1
    %p199 = por %p197, %p198
    %p201 = scmp.ne.s32.totalorder %s184, %s200
    %p202 = scmp.eq.s32.totalorder %s19, 0
    %p203 = por %p201, %p202
    %p204 = scmp.le.s32.totalorder 1, %s13
    %p205 = scmp.lt.s32.totalorder %s13, 3
    %p206 = pnand %p204, %p205
    %p207 = pneg %p206
    // Predicated region
    $region9: #{attentive_rnn_forward.1} parent=5 // pred_check
      _
    $region10: #{attentive_rnn_forward.1} parent=5 // pred_check_branch
      %209 = sbr.rel (%p206) target = $region12
    $region11: #{attentive_rnn_forward.1} parent=5 // pred_region
      %s210 = ssub.s32 %s13, 1
      // Predicated region
      $region13: #{attentive_rnn_forward.1} parent=11 // pred_check
        %p211 = pneg %p51
      $region14: #{attentive_rnn_forward.1} parent=11 // pred_check_branch
        %213 = sbr.rel (%p211) target = $region16
      $region15: #{attentive_rnn_forward.1} parent=11 // pred_region
        %p214 = scmp.lt.s32.totalorder %s22, 0
        %s215 = scalar_select %p214, %s22, 0
        %s216 = smul.addr %s215, 8
        %s217 = scalar_lea.vmem %s0, %s216
      $region16: #{attentive_rnn_forward.1} parent=11 // pred_fallthru
        _
      // Predicated region
      $region17: #{attentive_rnn_forward.1} parent=11 // pred_check
        %p218 = pneg %p100
      $region18: #{attentive_rnn_forward.1} parent=11 // pred_check_branch
        %220 = sbr.rel (%p218) target = $region20
      $region19: #{attentive_rnn_forward.1} parent=11 // pred_region
        _
      $region20: #{attentive_rnn_forward.1} parent=11 // pred_fallthru
        _
      // Predicated region
      $region21: #{attentive_rnn_forward.1} parent=11 // pred_check
        %p221 = pneg %p121
      $region22: #{attentive_rnn_forward.1} parent=11 // pred_check_branch
        %223 = sbr.rel (%p221) target = $region24
      $region23: #{attentive_rnn_forward.1} parent=11 // pred_region
        _
      $region24: #{attentive_rnn_forward.1} parent=11 // pred_fallthru
        _
      // Predicated region
      $region25: #{attentive_rnn_forward.1} parent=11 // pred_check
        %p224 = pneg %p142
      $region26: #{attentive_rnn_forward.1} parent=11 // pred_check_branch
        %226 = sbr.rel (%p224) target = $region28
      $region27: #{attentive_rnn_forward.1} parent=11 // pred_region
        _
      $region28: #{attentive_rnn_forward.1} parent=11 // pred_fallthru
        _
    $region12: #{attentive_rnn_forward.1} parent=5 // pred_fallthru
      _
    %p227 = scmp.lt.s32.totalorder %s13, 2
    // Predicated region
    $region29: #{attentive_rnn_forward.1} parent=5 // pred_check
      %p228 = pneg %p227
    $region30: #{attentive_rnn_forward.1} parent=5 // pred_check_branch
      %230 = sbr.rel (%p228) target = $region32
    $region31: #{attentive_rnn_forward.1} parent=5 // pred_region
      // Predicated region
      $region33: #{attentive_rnn_forward.1} parent=31 // pred_check
        %p231 = pneg %p73
      $region34: #{attentive_rnn_forward.1} parent=31 // pred_check_branch
        %233 = sbr.rel (%p231) target = $region36
      $region35: #{attentive_rnn_forward.1} parent=31 // pred_region
        %s234 = smul.u32 4, %s21
        %p235 = scmp.lt.s32.totalorder %s234, 7
        %s236 = scalar_select %p235, %s234, 7
        %p237 = scmp.lt.s32.totalorder %s20, 0
        %s238 = scalar_select %p237, %s20, 0
        %s239 = sadd.s32 %s238, %s236
        %s240 = smul.addr %s239, 8
        %s241 = scalar_lea.vmem %s1, %s240
        %s242 = smul.u32 4, %s21
      $region36: #{attentive_rnn_forward.1} parent=31 // pred_fallthru
        _
    $region32: #{attentive_rnn_forward.1} parent=5 // pred_fallthru
      _
    %p243 = scmp.le.s32.totalorder 1, %s13
    %p244 = scmp.lt.s32.totalorder %s13, 3
    %p245 = pnand %p243, %p244
    %p246 = pneg %p245
    // Predicated region
    $region37: #{attentive_rnn_forward.1} parent=5 // pred_check
      _
    $region38: #{attentive_rnn_forward.1} parent=5 // pred_check_branch
      %248 = sbr.rel (%p245) target = $region40
    $region39: #{attentive_rnn_forward.1} parent=5 // pred_region
      %s249 = ssub.s32 %s13, 1
      %p250 = scmp.lt.s32.totalorder %s22, 0
      %s251 = scalar_select %p250, %s22, 0
      %s252 = smul.addr %s251, 8
      %s253 = scalar_lea.vmem %s0, %s252
      %p254 = pneg %p51
      %p255 = pneg %p48
      %s256 = smul.u32 4, %s23
      %p257 = scmp.lt.s32.totalorder %s256, 7
      %s258 = scalar_select %p257, %s256, 7
      %p259 = scmp.lt.s32.totalorder %s22, 0
      %s260 = scalar_select %p259, %s22, 0
      %s261 = sadd.s32 %s260, %s258
      %s262 = smul.addr %s261, 8
      %s263 = scalar_lea.vmem %s1, %s262
      %p264 = pneg %p79
      %p265 = pneg %p76
      %p266 = pneg %p100
      %p267 = pneg %p97
      %p268 = pneg %p121
      %p269 = pneg %p118
      %p270 = pneg %p142
      %p271 = pneg %p139
      %p272 = pneg %p170
      %p273 = pneg %p167
      %s274 = smul.u32 4, %s23
      %p275 = scmp.lt.s32.totalorder %s274, 7
      %s276 = scalar_select %p275, %s274, 7
      %p277 = scmp.lt.s32.totalorder %s22, 0
      %s278 = scalar_select %p277, %s22, 0
      %s279 = sadd.s32 %s278, %s276
      %s280 = smul.addr %s279, 8
      %s281 = scalar_lea.vmem %s5, %s280
      %p282 = pneg %p196
      %p283 = pneg %p193
      %p284 = scmp.lt.s32.totalorder %s22, 0
      %s285 = scalar_select %p284, %s22, 0
      %s286 = smul.addr %s285, 8
      %s287 = scalar_lea.vmem %s6, %s286
      %p288 = scmp.lt.s32.totalorder %s22, 0
      %s289 = scalar_select %p288, %s22, 0
      %s290 = smul.addr %s289, 8
      %s291 = scalar_lea.vmem %s0, %s290
      %s292 = smul.u32 4, %s23
      %p293 = scmp.lt.s32.totalorder %s292, 7
      %s294 = scalar_select %p293, %s292, 7
      %p295 = scmp.lt.s32.totalorder %s22, 0
      %s296 = scalar_select %p295, %s22, 0
      %s297 = sadd.s32 %s296, %s294
      %s298 = smul.addr %s297, 8
      %s299 = scalar_lea.vmem %s1, %s298
      %s300 = smul.u32 4, %s23
      %s301 = smul.u32 4, %s23
      %p302 = scmp.lt.s32.totalorder %s301, 7
      %s303 = scalar_select %p302, %s301, 7
      %p304 = scmp.lt.s32.totalorder %s22, 0
      %s305 = scalar_select %p304, %s22, 0
      %s306 = sadd.s32 %s305, %s303
      %s307 = smul.addr %s306, 8
      %s308 = scalar_lea.vmem %s5, %s307
      %s309 = smul.u32 4, %s23
      %p310 = scmp.lt.s32.totalorder %s22, 0
      %s311 = scalar_select %p310, %s22, 0
      %s312 = smul.addr %s311, 8
      %s313 = scalar_lea.vmem %s6, %s312
      %p314 = scmp.eq.s32.totalorder %s23, 0
      // Predicated region
      $region41: #{attentive_rnn_forward.1} parent=39 // pred_check
        %p315 = pneg %p314
      $region42: #{attentive_rnn_forward.1} parent=39 // pred_check_branch
        %317 = sbr.rel (%p315) target = $region44
      $region43: #{attentive_rnn_forward.1} parent=39 // pred_region
        %318 = vst [vmem:[#allocation3] sm:$0xff] 0.0
        %319 = vst [vmem:[#allocation4] sm:$0xff] 0.0
        %320 = vst [vmem:[%s313] sm:$0xff] 0.0
      $region44: #{attentive_rnn_forward.1} parent=39 // pred_fallthru
        _
      %v321 = vld [vmem:[%s299] sm:$0xff]
      %v322 = vld [vmem:[%s299 + $0x8] sm:$0xff]
      %v323 = vld [vmem:[%s299 + $0x10] sm:$0xff]
      %v324 = vld [vmem:[%s299 + $0x18] sm:$0xff]
      %v325 = vld [vmem:[%s2] sm:$0xff]
      %v326 = vld [vmem:[%s2 + $0x8] sm:$0xff]
      %v327 = vld [vmem:[%s2 + $0x10] sm:$0xff]
      %v328 = vld [vmem:[%s2 + $0x18] sm:$0xff]
      %v329 = vld [vmem:[%s2 + $0x20] sm:$0xff]
      %v330 = vld [vmem:[%s2 + $0x28] sm:$0xff]
      %v331 = vld [vmem:[%s2 + $0x30] sm:$0xff]
      %v332 = vld [vmem:[%s2 + $0x38] sm:$0xff]
      %v333 = vld [vmem:[%s4] sm:$0xf]
      %v335 = vlaneseq
      %v336 = vshrl.u32 %v335, 7
      %v337 = vsub.s32 0, %v336
      %v338 = vrot.slane %v333, %v337
      %v339 = vlaneseq
      %v340 = vshrl.u32 %v339, 7
      %v341 = vsub.s32 1, %v340
      %v342 = vrot.slane %v333, %v341
      %v343 = vlaneseq
      %v344 = vshrl.u32 %v343, 7
      %v345 = vsub.s32 2, %v344
      %v346 = vrot.slane %v333, %v345
      %v347 = vlaneseq
      %v348 = vshrl.u32 %v347, 7
      %v349 = vsub.s32 3, %v348
      %v350 = vrot.slane %v333, %v349
      %vm355 = vcmask 130048
      %v357 = vsel %vm355, %v321, 0
      %v360 = vsel %vm355, %v322, 0
      %v363 = vsel %vm355, %v323, 0
      %v366 = vsel %vm355, %v324, 0
      %368 = vmatprep.subr.mxu0 %v326
      %369 = vmatpush1.msra.mxu0 %v325
      %370 = vmatprep.subr.mxu0 %v330
      %371 = vmatpush1.msra.mxu0 %v329
      %372 = vmatprep.subr.mxu0 0.0
      %373 = vmatpush1.msra.mxu0 0.0
      %374 = vmatprep.subr.mxu0 0.0
      %375 = vmatpush1.msra.mxu0 0.0
      %376 = vmatprep.subr.mxu0 0.0
      %377 = vmatpush1.msra.mxu0 0.0
      %378 = vmatprep.subr.mxu0 0.0
      %379 = vmatpush1.msra.mxu0 0.0
      %380 = vmatprep.subr.mxu0 0.0
      %381 = vmatpush1.msra.mxu0 0.0
      %382 = vmatprep.subr.mxu0 0.0
      %383 = vmatpush1.msra.mxu0 0.0
      %384 = vmatprep.subr.mxu0 0.0
      %385 = vmatpush1.msra.mxu0 0.0
      %386 = vmatprep.subr.mxu0 0.0
      %387 = vmatpush1.msra.mxu0 0.0
      %388 = vmatprep.subr.mxu0 0.0
      %389 = vmatpush1.msra.mxu0 0.0
      %390 = vmatprep.subr.mxu0 0.0
      %391 = vmatpush1.msra.mxu0 0.0
      %392 = vmatprep.subr.mxu0 0.0
      %393 = vmatpush1.msra.mxu0 0.0
      %394 = vmatprep.subr.mxu0 0.0
      %395 = vmatpush1.msra.mxu0 0.0
      %396 = vmatprep.subr.mxu0 0.0
      %397 = vmatpush1.msra.mxu0 0.0
      %398 = vmatprep.subr.mxu0 0.0
      %399 = vmatpush1.msra.mxu0 0.0
      %400 = vmatprep.subr.mxu0 0.0
      %401 = vmatpush1.msra.mxu0 0.0
      %402 = vmatprep.subr.mxu0 0.0
      %403 = vmatpush1.msra.mxu0 0.0
      %404 = vmatprep.subr.mxu0 0.0
      %405 = vmatpush1.msra.mxu0 0.0
      %406 = vmatprep.subr.mxu0 0.0
      %407 = vmatpush1.msra.mxu0 0.0
      %408 = vmatprep.subr.mxu0 0.0
      %409 = vmatpush1.msra.mxu0 0.0
      %410 = vmatprep.subr.mxu0 0.0
      %411 = vmatpush1.msra.mxu0 0.0
      %412 = vmatprep.subr.mxu0 0.0
      %413 = vmatpush1.msra.mxu0 0.0
      %414 = vmatprep.subr.mxu0 0.0
      %415 = vmatpush1.msra.mxu0 0.0
      %416 = vmatprep.subr.mxu0 0.0
      %417 = vmatpush1.msra.mxu0 0.0
      %418 = vmatprep.subr.mxu0 0.0
      %419 = vmatpush1.msra.mxu0 0.0
      %420 = vmatprep.subr.mxu0 0.0
      %421 = vmatpush1.msra.mxu0 0.0
      %422 = vmatprep.subr.mxu0 0.0
      %423 = vmatpush1.msra.mxu0 0.0
      %424 = vmatprep.subr.mxu0 0.0
      %425 = vmatpush1.msra.mxu0 0.0
      %426 = vmatprep.subr.mxu0 0.0
      %427 = vmatpush1.msra.mxu0 0.0
      %428 = vmatprep.subr.mxu0 0.0
      %429 = vmatpush1.msra.mxu0 0.0
      %430 = vmatprep.subr.mxu0 0.0
      %431 = vmatpush1.msra.mxu0 0.0
      %432 = vmatprep.mubr.f32.mxu0 0.0
      %433 = vmatmul.mubr.f32.gmra.mrb[0].mxu0 %v357
      %v434 = vpop.f32.mrb[0].mxu0
      %v435 = vadd.f32 %v338, %v434
      %v436 = vpop.f32.mrb[0].mxu0
      %v437 = vadd.f32 %v342, %v436
      %438 = vmatprep.mubr.f32.mxu0 0.0
      %439 = vmatmul.mubr.f32.gmra.mrb[0].mxu0 %v360
      %v440 = vpop.f32.mrb[0].mxu0
      %v441 = vadd.f32 %v338, %v440
      %v442 = vpop.f32.mrb[0].mxu0
      %v443 = vadd.f32 %v342, %v442
      %444 = vmatprep.mubr.f32.mxu0 0.0
      %445 = vmatmul.mubr.f32.gmra.mrb[0].mxu0 %v363
      %v446 = vpop.f32.mrb[0].mxu0
      %v447 = vadd.f32 %v338, %v446
      %v448 = vpop.f32.mrb[0].mxu0
      %v449 = vadd.f32 %v342, %v448
      %450 = vmatprep.mubr.f32.mxu0 0.0
      %451 = vmatmul.mubr.f32.gmra.mrb[0].mxu0 %v366
      %v452 = vpop.f32.mrb[0].mxu0
      %v453 = vadd.f32 %v338, %v452
      %v454 = vpop.f32.mrb[0].mxu0
      %v455 = vadd.f32 %v342, %v454
      %456 = vdwg.mxu0
      %457 = vmatprep.subr.mxu0 %v328
      %458 = vmatpush1.msra.mxu0 %v327
      %459 = vmatprep.subr.mxu0 %v332
      %460 = vmatpush1.msra.mxu0 %v331
      %461 = vmatprep.subr.mxu0 0.0
      %462 = vmatpush1.msra.mxu0 0.0
      %463 = vmatprep.subr.mxu0 0.0
      %464 = vmatpush1.msra.mxu0 0.0
      %465 = vmatprep.subr.mxu0 0.0
      %466 = vmatpush1.msra.mxu0 0.0
      %467 = vmatprep.subr.mxu0 0.0
      %468 = vmatpush1.msra.mxu0 0.0
      %469 = vmatprep.subr.mxu0 0.0
      %470 = vmatpush1.msra.mxu0 0.0
      %471 = vmatprep.subr.mxu0 0.0
      %472 = vmatpush1.msra.mxu0 0.0
      %473 = vmatprep.subr.mxu0 0.0
      %474 = vmatpush1.msra.mxu0 0.0
      %475 = vmatprep.subr.mxu0 0.0
      %476 = vmatpush1.msra.mxu0 0.0
      %477 = vmatprep.subr.mxu0 0.0
      %478 = vmatpush1.msra.mxu0 0.0
      %479 = vmatprep.subr.mxu0 0.0
      %480 = vmatpush1.msra.mxu0 0.0
      %481 = vmatprep.subr.mxu0 0.0
      %482 = vmatpush1.msra.mxu0 0.0
      %483 = vmatprep.subr.mxu0 0.0
      %484 = vmatpush1.msra.mxu0 0.0
      %485 = vmatprep.subr.mxu0 0.0
      %486 = vmatpush1.msra.mxu0 0.0
      %487 = vmatprep.subr.mxu0 0.0
      %488 = vmatpush1.msra.mxu0 0.0
      %489 = vmatprep.subr.mxu0 0.0
      %490 = vmatpush1.msra.mxu0 0.0
      %491 = vmatprep.subr.mxu0 0.0
      %492 = vmatpush1.msra.mxu0 0.0
      %493 = vmatprep.subr.mxu0 0.0
      %494 = vmatpush1.msra.mxu0 0.0
      %495 = vmatprep.subr.mxu0 0.0
      %496 = vmatpush1.msra.mxu0 0.0
      %497 = vmatprep.subr.mxu0 0.0
      %498 = vmatpush1.msra.mxu0 0.0
      %499 = vmatprep.subr.mxu0 0.0
      %500 = vmatpush1.msra.mxu0 0.0
      %501 = vmatprep.subr.mxu0 0.0
      %502 = vmatpush1.msra.mxu0 0.0
      %503 = vmatprep.subr.mxu0 0.0
      %504 = vmatpush1.msra.mxu0 0.0
      %505 = vmatprep.subr.mxu0 0.0
      %506 = vmatpush1.msra.mxu0 0.0
      %507 = vmatprep.subr.mxu0 0.0
      %508 = vmatpush1.msra.mxu0 0.0
      %509 = vmatprep.subr.mxu0 0.0
      %510 = vmatpush1.msra.mxu0 0.0
      %511 = vmatprep.subr.mxu0 0.0
      %512 = vmatpush1.msra.mxu0 0.0
      %513 = vmatprep.subr.mxu0 0.0
      %514 = vmatpush1.msra.mxu0 0.0
      %515 = vmatprep.subr.mxu0 0.0
      %516 = vmatpush1.msra.mxu0 0.0
      %517 = vmatprep.subr.mxu0 0.0
      %518 = vmatpush1.msra.mxu0 0.0
      %519 = vmatprep.subr.mxu0 0.0
      %520 = vmatpush1.msra.mxu0 0.0
      %521 = vmatprep.mubr.f32.mxu0 0.0
      %522 = vmatmul.mubr.f32.gmra.mrb[0].mxu0 %v357
      %v523 = vpop.f32.mrb[0].mxu0
      %v524 = vadd.f32 %v346, %v523
      %v525 = vpop.f32.mrb[0].mxu0
      %v526 = vadd.f32 %v350, %v525
      %527 = vmatprep.mubr.f32.mxu0 0.0
      %528 = vmatmul.mubr.f32.gmra.mrb[0].mxu0 %v360
      %v529 = vpop.f32.mrb[0].mxu0
      %v530 = vadd.f32 %v346, %v529
      %v531 = vpop.f32.mrb[0].mxu0
      %v532 = vadd.f32 %v350, %v531
      %533 = vmatprep.mubr.f32.mxu0 0.0
      %534 = vmatmul.mubr.f32.gmra.mrb[0].mxu0 %v363
      %v535 = vpop.f32.mrb[0].mxu0
      %v536 = vadd.f32 %v346, %v535
      %v537 = vpop.f32.mrb[0].mxu0
      %v538 = vadd.f32 %v350, %v537
      %539 = vmatprep.mubr.f32.mxu0 0.0
      %540 = vmatmul.mubr.f32.gmra.mrb[0].mxu0 %v366
      %v541 = vpop.f32.mrb[0].mxu0
      %v542 = vadd.f32 %v346, %v541
      %v543 = vpop.f32.mrb[0].mxu0
      %v544 = vadd.f32 %v350, %v543
      %545 = vdwg.mxu0
      %546 = vst [vmem:[#allocation2] sm:$0xff] %v435
      %547 = vst [vmem:[#allocation2 + $0x8] sm:$0xff] %v437
      %548 = vst [vmem:[#allocation2 + $0x10] sm:$0xff] %v524
      %549 = vst [vmem:[#allocation2 + $0x18] sm:$0xff] %v526
      %550 = vst [vmem:[#allocation2 + $0x20] sm:$0xff] %v441
      %551 = vst [vmem:[#allocation2 + $0x28] sm:$0xff] %v443
      %552 = vst [vmem:[#allocation2 + $0x30] sm:$0xff] %v530
      %553 = vst [vmem:[#allocation2 + $0x38] sm:$0xff] %v532
      %554 = vst [vmem:[#allocation2 + $0x40] sm:$0xff] %v447
      %555 = vst [vmem:[#allocation2 + $0x48] sm:$0xff] %v449
      %556 = vst [vmem:[#allocation2 + $0x50] sm:$0xff] %v536
      %557 = vst [vmem:[#allocation2 + $0x58] sm:$0xff] %v538
      %558 = vst [vmem:[#allocation2 + $0x60] sm:$0xff] %v453
      %559 = vst [vmem:[#allocation2 + $0x68] sm:$0xff] %v455
      %560 = vst [vmem:[#allocation2 + $0x70] sm:$0xff] %v542
      %561 = vst [vmem:[#allocation2 + $0x78] sm:$0xff] %v544
      %v562 = vld [vmem:[%s3] sm:$0xff]
      %v563 = vld [vmem:[%s3 + $0x8] sm:$0xff]
      %v564 = vld [vmem:[%s3 + $0x10] sm:$0xff]
      %v565 = vld [vmem:[%s3 + $0x18] sm:$0xff]
      %v566 = vld [vmem:[%s3 + $0x20] sm:$0xff]
      %v567 = vld [vmem:[%s3 + $0x28] sm:$0xff]
      %v568 = vld [vmem:[%s3 + $0x30] sm:$0xff]
      %v569 = vld [vmem:[%s3 + $0x38] sm:$0xff]
      %v570 = vld [vmem:[%s3 + $0x40] sm:$0xff]
      %v571 = vld [vmem:[%s3 + $0x48] sm:$0xff]
      %v572 = vld [vmem:[%s3 + $0x50] sm:$0xff]
      %v573 = vld [vmem:[%s3 + $0x58] sm:$0xff]
      %v574 = vld [vmem:[%s3 + $0x60] sm:$0xff]
      %v575 = vld [vmem:[%s3 + $0x68] sm:$0xff]
      %v576 = vld [vmem:[%s3 + $0x70] sm:$0xff]
      %v577 = vld [vmem:[%s3 + $0x78] sm:$0xff]
      %v578 = vld [vmem:[%s3 + $0x80] sm:$0xff]
      %v579 = vld [vmem:[%s3 + $0x88] sm:$0xff]
      %v580 = vld [vmem:[%s3 + $0x90] sm:$0xff]
      %v581 = vld [vmem:[%s3 + $0x98] sm:$0xff]
      %v582 = vld [vmem:[%s3 + $0xa0] sm:$0xff]
      %v583 = vld [vmem:[%s3 + $0xa8] sm:$0xff]
      %v584 = vld [vmem:[%s3 + $0xb0] sm:$0xff]
      %v585 = vld [vmem:[%s3 + $0xb8] sm:$0xff]
      %v586 = vld [vmem:[%s3 + $0xc0] sm:$0xff]
      %v587 = vld [vmem:[%s3 + $0xc8] sm:$0xff]
      %v588 = vld [vmem:[%s3 + $0xd0] sm:$0xff]
      %v589 = vld [vmem:[%s3 + $0xd8] sm:$0xff]
      %v590 = vld [vmem:[%s3 + $0xe0] sm:$0xff]
      %v591 = vld [vmem:[%s3 + $0xe8] sm:$0xff]
      %v592 = vld [vmem:[%s3 + $0xf0] sm:$0xff]
      %v593 = vld [vmem:[%s3 + $0xf8] sm:$0xff]
      %v594 = vld [vmem:[%s3 + $0x100] sm:$0xff]
      %v595 = vld [vmem:[%s3 + $0x108] sm:$0xff]
      %v596 = vld [vmem:[%s3 + $0x110] sm:$0xff]
      %v597 = vld [vmem:[%s3 + $0x118] sm:$0xff]
      %v598 = vld [vmem:[%s3 + $0x120] sm:$0xff]
      %v599 = vld [vmem:[%s3 + $0x128] sm:$0xff]
      %v600 = vld [vmem:[%s3 + $0x130] sm:$0xff]
      %v601 = vld [vmem:[%s3 + $0x138] sm:$0xff]
      %v602 = vld [vmem:[%s3 + $0x140] sm:$0xff]
      %v603 = vld [vmem:[%s3 + $0x148] sm:$0xff]
      %v604 = vld [vmem:[%s3 + $0x150] sm:$0xff]
      %v605 = vld [vmem:[%s3 + $0x158] sm:$0xff]
      %v606 = vld [vmem:[%s3 + $0x160] sm:$0xff]
      %v607 = vld [vmem:[%s3 + $0x168] sm:$0xff]
      %v608 = vld [vmem:[%s3 + $0x170] sm:$0xff]
      %v609 = vld [vmem:[%s3 + $0x178] sm:$0xff]
      %v610 = vld [vmem:[%s3 + $0x180] sm:$0xff]
      %v611 = vld [vmem:[%s3 + $0x188] sm:$0xff]
      %v612 = vld [vmem:[%s3 + $0x190] sm:$0xff]
      %v613 = vld [vmem:[%s3 + $0x198] sm:$0xff]
      %v614 = vld [vmem:[%s3 + $0x1a0] sm:$0xff]
      %v615 = vld [vmem:[%s3 + $0x1a8] sm:$0xff]
      %v616 = vld [vmem:[%s3 + $0x1b0] sm:$0xff]
      %v617 = vld [vmem:[%s3 + $0x1b8] sm:$0xff]
      %v618 = vld [vmem:[%s3 + $0x1c0] sm:$0xff]
      %v619 = vld [vmem:[%s3 + $0x1c8] sm:$0xff]
      %v620 = vld [vmem:[%s3 + $0x1d0] sm:$0xff]
      %v621 = vld [vmem:[%s3 + $0x1d8] sm:$0xff]
      %v622 = vld [vmem:[%s3 + $0x1e0] sm:$0xff]
      %v623 = vld [vmem:[%s3 + $0x1e8] sm:$0xff]
      %v624 = vld [vmem:[%s3 + $0x1f0] sm:$0xff]
      %v625 = vld [vmem:[%s3 + $0x1f8] sm:$0xff]
      %v626 = vld [vmem:[%s291] sm:$0xff]
      %s627 = smul.u32 %s23, 4
      %v628 = vld [vmem:[#allocation3] sm:$0xff]
      %v629 = vld [vmem:[#allocation4] sm:$0xff]
      %v630 = vld [vmem:[%s313] sm:$0xff]
      %v631 = vld [vmem:[#allocation2] sm:$0xff]
      %v632 = vld [vmem:[#allocation2 + $0x8] sm:$0xff]
      %v633 = vld [vmem:[#allocation2 + $0x10] sm:$0xff]
      %v634 = vld [vmem:[#allocation2 + $0x18] sm:$0xff]
      %635 = vmatprep.subr.mxu0 %v563
      %636 = vmatpush1.msra.mxu0 %v562
      %637 = vmatprep.subr.mxu0 %v567
      %638 = vmatpush1.msra.mxu0 %v566
      %639 = vmatprep.subr.mxu0 %v571
      %640 = vmatpush1.msra.mxu0 %v570
      %641 = vmatprep.subr.mxu0 %v575
      %642 = vmatpush1.msra.mxu0 %v574
      %643 = vmatprep.subr.mxu0 %v579
      %644 = vmatpush1.msra.mxu0 %v578
      %645 = vmatprep.subr.mxu0 %v583
      %646 = vmatpush1.msra.mxu0 %v582
      %647 = vmatprep.subr.mxu0 %v587
      %648 = vmatpush1.msra.mxu0 %v586
      %649 = vmatprep.subr.mxu0 %v591
      %650 = vmatpush1.msra.mxu0 %v590
      %651 = vmatprep.subr.mxu0 %v595
      %652 = vmatpush1.msra.mxu0 %v594
      %653 = vmatprep.subr.mxu0 %v599
      %654 = vmatpush1.msra.mxu0 %v598
      %655 = vmatprep.subr.mxu0 %v603
      %656 = vmatpush1.msra.mxu0 %v602
      %657 = vmatprep.subr.mxu0 %v607
      %658 = vmatpush1.msra.mxu0 %v606
      %659 = vmatprep.subr.mxu0 %v611
      %660 = vmatpush1.msra.mxu0 %v610
      %661 = vmatprep.subr.mxu0 %v615
      %662 = vmatpush1.msra.mxu0 %v614
      %663 = vmatprep.subr.mxu0 %v619
      %664 = vmatpush1.msra.mxu0 %v618
      %665 = vmatprep.subr.mxu0 %v623
      %666 = vmatpush1.msra.mxu0 %v622
      %667 = vmatprep.subr.mxu0 0.0
      %668 = vmatpush1.msra.mxu0 0.0
      %669 = vmatprep.subr.mxu0 0.0
      %670 = vmatpush1.msra.mxu0 0.0
      %671 = vmatprep.subr.mxu0 0.0
      %672 = vmatpush1.msra.mxu0 0.0
      %673 = vmatprep.subr.mxu0 0.0
      %674 = vmatpush1.msra.mxu0 0.0
      %675 = vmatprep.subr.mxu0 0.0
      %676 = vmatpush1.msra.mxu0 0.0
      %677 = vmatprep.subr.mxu0 0.0
      %678 = vmatpush1.msra.mxu0 0.0
      %679 = vmatprep.subr.mxu0 0.0
      %680 = vmatpush1.msra.mxu0 0.0
      %681 = vmatprep.subr.mxu0 0.0
      %682 = vmatpush1.msra.mxu0 0.0
      %683 = vmatprep.subr.mxu0 0.0
      %684 = vmatpush1.msra.mxu0 0.0
      %685 = vmatprep.subr.mxu0 0.0
      %686 = vmatpush1.msra.mxu0 0.0
      %687 = vmatprep.subr.mxu0 0.0
      %688 = vmatpush1.msra.mxu0 0.0
      %689 = vmatprep.subr.mxu0 0.0
      %690 = vmatpush1.msra.mxu0 0.0
      %691 = vmatprep.subr.mxu0 0.0
      %692 = vmatpush1.msra.mxu0 0.0
      %693 = vmatprep.subr.mxu0 0.0
      %694 = vmatpush1.msra.mxu0 0.0
      %695 = vmatprep.subr.mxu0 0.0
      %696 = vmatpush1.msra.mxu0 0.0
      %697 = vmatprep.subr.mxu0 0.0
      %698 = vmatpush1.msra.mxu0 0.0
      %699 = vmatprep.mubr.f32.mxu0 0.0
      %700 = vmatmul.mubr.f32.gmra.mrb[0].mxu0 %v628
      %v701 = vpop.f32.mrb[0].mxu0
      %v702 = vadd.f32 0.0, %v701
      %v703 = vpop.f32.mrb[0].mxu0
      %v704 = vadd.f32 0.0, %v703
      %705 = vdwg.mxu0
      %706 = vmatprep.subr.mxu0 %v565
      %707 = vmatpush1.msra.mxu0 %v564
      %708 = vmatprep.subr.mxu0 %v569
      %709 = vmatpush1.msra.mxu0 %v568
      %710 = vmatprep.subr.mxu0 %v573
      %711 = vmatpush1.msra.mxu0 %v572
      %712 = vmatprep.subr.mxu0 %v577
      %713 = vmatpush1.msra.mxu0 %v576
      %714 = vmatprep.subr.mxu0 %v581
      %715 = vmatpush1.msra.mxu0 %v580
      %716 = vmatprep.subr.mxu0 %v585
      %717 = vmatpush1.msra.mxu0 %v584
      %718 = vmatprep.subr.mxu0 %v589
      %719 = vmatpush1.msra.mxu0 %v588
      %720 = vmatprep.subr.mxu0 %v593
      %721 = vmatpush1.msra.mxu0 %v592
      %722 = vmatprep.subr.mxu0 %v597
      %723 = vmatpush1.msra.mxu0 %v596
      %724 = vmatprep.subr.mxu0 %v601
      %725 = vmatpush1.msra.mxu0 %v600
      %726 = vmatprep.subr.mxu0 %v605
      %727 = vmatpush1.msra.mxu0 %v604
      %728 = vmatprep.subr.mxu0 %v609
      %729 = vmatpush1.msra.mxu0 %v608
      %730 = vmatprep.subr.mxu0 %v613
      %731 = vmatpush1.msra.mxu0 %v612
      %732 = vmatprep.subr.mxu0 %v617
      %733 = vmatpush1.msra.mxu0 %v616
      %734 = vmatprep.subr.mxu0 %v621
      %735 = vmatpush1.msra.mxu0 %v620
      %736 = vmatprep.subr.mxu0 %v625
      %737 = vmatpush1.msra.mxu0 %v624
      %738 = vmatprep.subr.mxu0 0.0
      %739 = vmatpush1.msra.mxu0 0.0
      %740 = vmatprep.subr.mxu0 0.0
      %741 = vmatpush1.msra.mxu0 0.0
      %742 = vmatprep.subr.mxu0 0.0
      %743 = vmatpush1.msra.mxu0 0.0
      %744 = vmatprep.subr.mxu0 0.0
      %745 = vmatpush1.msra.mxu0 0.0
      %746 = vmatprep.subr.mxu0 0.0
      %747 = vmatpush1.msra.mxu0 0.0
      %748 = vmatprep.subr.mxu0 0.0
      %749 = vmatpush1.msra.mxu0 0.0
      %750 = vmatprep.subr.mxu0 0.0
      %751 = vmatpush1.msra.mxu0 0.0
      %752 = vmatprep.subr.mxu0 0.0
      %753 = vmatpush1.msra.mxu0 0.0
      %754 = vmatprep.subr.mxu0 0.0
      %755 = vmatpush1.msra.mxu0 0.0
      %756 = vmatprep.subr.mxu0 0.0
      %757 = vmatpush1.msra.mxu0 0.0
      %758 = vmatprep.subr.mxu0 0.0
      %759 = vmatpush1.msra.mxu0 0.0
      %760 = vmatprep.subr.mxu0 0.0
      %761 = vmatpush1.msra.mxu0 0.0
      %762 = vmatprep.subr.mxu0 0.0
      %763 = vmatpush1.msra.mxu0 0.0
      %764 = vmatprep.subr.mxu0 0.0
      %765 = vmatpush1.msra.mxu0 0.0
      %766 = vmatprep.subr.mxu0 0.0
      %767 = vmatpush1.msra.mxu0 0.0
      %768 = vmatprep.subr.mxu0 0.0
      %769 = vmatpush1.msra.mxu0 0.0
      %770 = vmatprep.mubr.f32.mxu0 0.0
      %771 = vmatmul.mubr.f32.gmra.mrb[0].mxu0 %v628
      %v772 = vpop.f32.mrb[0].mxu0
      %v773 = vadd.f32 0.0, %v772
      %v774 = vpop.f32.mrb[0].mxu0
      %v775 = vadd.f32 0.0, %v774
      %776 = vdwg.mxu0
      %v777 = vadd.f32 %v631, %v702
      %v778 = vadd.f32 %v632, %v704
      %v779 = vadd.f32 %v633, %v773
      %v780 = vadd.f32 %v634, %v775
      %v781 = vmul.f32 %v777, 0.5
      %v782 = vtanh.pop %v781
      %v783 = vmul.f32 %v782, 0.5
      %v784 = vadd.f32 %v783, 0.5
      %v785 = vmul.f32 %v778, 0.5
      %v786 = vtanh.pop %v785
      %v787 = vmul.f32 %v786, 0.5
      %v788 = vadd.f32 %v787, 0.5
      %v789 = vtanh.pop %v779
      %v790 = vmul.f32 %v780, 0.5
      %v791 = vtanh.pop %v790
      %v792 = vmul.f32 %v791, 0.5
      %v793 = vadd.f32 %v792, 0.5
      %v794 = vmul.f32 %v788, %v629
      %v795 = vmul.f32 %v784, %v789
      %v796 = vadd.f32 %v794, %v795
      %v797 = vtanh.pop %v796
      %v798 = vmul.f32 %v793, %v797
      %v799 = vstv %s627
      %vm800 = vcmp.gt.s32.totalorder %v626, %v799
      %s801 = sadd.s32 %s627, 1
      %v802 = vstv %s801
      %vm803 = vcmp.eq.s32.totalorder %v626, %v802
      %v804 = vsel %vm800, 1, 0
      %805 = vset.pattern.permute.xlu0 0
      %806 = vperm.xlu0 %805, %v804
      %v807 = vpop.permute.xlu0 %806
      %vm808 = vcmp.eq.s32.totalorder %v807, 1
      %v809 = vsel %vm808, %v798, 0.0
      %810 = vst [vmem:[%s308] sm:$0xff] %v809
      %v811 = vsel %vm803, 1, 0
      %812 = vset.pattern.permute.xlu0 0
      %813 = vperm.xlu0 %812, %v811
      %v814 = vpop.permute.xlu0 %813
      %vm815 = vcmp.eq.s32.totalorder %v814, 1
      %v816 = vsel %vm815, %v798, %v630
      %s817 = scalar_lea.vmem [#allocation2], 32
      %v818 = vld [vmem:[%s817] sm:$0xff]
      %v819 = vld [vmem:[%s817 + $0x8] sm:$0xff]
      %v820 = vld [vmem:[%s817 + $0x10] sm:$0xff]
      %v821 = vld [vmem:[%s817 + $0x18] sm:$0xff]
      %822 = vmatprep.subr.mxu0 %v563
      %823 = vmatpush1.msra.mxu0 %v562
      %824 = vmatprep.subr.mxu0 %v567
      %825 = vmatpush1.msra.mxu0 %v566
      %826 = vmatprep.subr.mxu0 %v571
      %827 = vmatpush1.msra.mxu0 %v570
      %828 = vmatprep.subr.mxu0 %v575
      %829 = vmatpush1.msra.mxu0 %v574
      %830 = vmatprep.subr.mxu0 %v579
      %831 = vmatpush1.msra.mxu0 %v578
      %832 = vmatprep.subr.mxu0 %v583
      %833 = vmatpush1.msra.mxu0 %v582
      %834 = vmatprep.subr.mxu0 %v587
      %835 = vmatpush1.msra.mxu0 %v586
      %836 = vmatprep.subr.mxu0 %v591
      %837 = vmatpush1.msra.mxu0 %v590
      %838 = vmatprep.subr.mxu0 %v595
      %839 = vmatpush1.msra.mxu0 %v594
      %840 = vmatprep.subr.mxu0 %v599
      %841 = vmatpush1.msra.mxu0 %v598
      %842 = vmatprep.subr.mxu0 %v603
      %843 = vmatpush1.msra.mxu0 %v602
      %844 = vmatprep.subr.mxu0 %v607
      %845 = vmatpush1.msra.mxu0 %v606
      %846 = vmatprep.subr.mxu0 %v611
      %847 = vmatpush1.msra.mxu0 %v610
      %848 = vmatprep.subr.mxu0 %v615
      %849 = vmatpush1.msra.mxu0 %v614
      %850 = vmatprep.subr.mxu0 %v619
      %851 = vmatpush1.msra.mxu0 %v618
      %852 = vmatprep.subr.mxu0 %v623
      %853 = vmatpush1.msra.mxu0 %v622
      %854 = vmatprep.subr.mxu0 0.0
      %855 = vmatpush1.msra.mxu0 0.0
      %856 = vmatprep.subr.mxu0 0.0
      %857 = vmatpush1.msra.mxu0 0.0
      %858 = vmatprep.subr.mxu0 0.0
      %859 = vmatpush1.msra.mxu0 0.0
      %860 = vmatprep.subr.mxu0 0.0
      %861 = vmatpush1.msra.mxu0 0.0
      %862 = vmatprep.subr.mxu0 0.0
      %863 = vmatpush1.msra.mxu0 0.0
      %864 = vmatprep.subr.mxu0 0.0
      %865 = vmatpush1.msra.mxu0 0.0
      %866 = vmatprep.subr.mxu0 0.0
      %867 = vmatpush1.msra.mxu0 0.0
      %868 = vmatprep.subr.mxu0 0.0
      %869 = vmatpush1.msra.mxu0 0.0
      %870 = vmatprep.subr.mxu0 0.0
      %871 = vmatpush1.msra.mxu0 0.0
      %872 = vmatprep.subr.mxu0 0.0
      %873 = vmatpush1.msra.mxu0 0.0
      %874 = vmatprep.subr.mxu0 0.0
      %875 = vmatpush1.msra.mxu0 0.0
      %876 = vmatprep.subr.mxu0 0.0
      %877 = vmatpush1.msra.mxu0 0.0
      %878 = vmatprep.subr.mxu0 0.0
      %879 = vmatpush1.msra.mxu0 0.0
      %880 = vmatprep.subr.mxu0 0.0
      %881 = vmatpush1.msra.mxu0 0.0
      %882 = vmatprep.subr.mxu0 0.0
      %883 = vmatpush1.msra.mxu0 0.0
      %884 = vmatprep.subr.mxu0 0.0
      %885 = vmatpush1.msra.mxu0 0.0
      %886 = vmatprep.mubr.f32.mxu0 0.0
      %887 = vmatmul.mubr.f32.gmra.mrb[0].mxu0 %v798
      %v888 = vpop.f32.mrb[0].mxu0
      %v889 = vadd.f32 0.0, %v888
      %v890 = vpop.f32.mrb[0].mxu0
      %v891 = vadd.f32 0.0, %v890
      %892 = vdwg.mxu0
      %893 = vmatprep.subr.mxu0 %v565
      %894 = vmatpush1.msra.mxu0 %v564
      %895 = vmatprep.subr.mxu0 %v569
      %896 = vmatpush1.msra.mxu0 %v568
      %897 = vmatprep.subr.mxu0 %v573
      %898 = vmatpush1.msra.mxu0 %v572
      %899 = vmatprep.subr.mxu0 %v577
      %900 = vmatpush1.msra.mxu0 %v576
      %901 = vmatprep.subr.mxu0 %v581
      %902 = vmatpush1.msra.mxu0 %v580
      %903 = vmatprep.subr.mxu0 %v585
      %904 = vmatpush1.msra.mxu0 %v584
      %905 = vmatprep.subr.mxu0 %v589
      %906 = vmatpush1.msra.mxu0 %v588
      %907 = vmatprep.subr.mxu0 %v593
      %908 = vmatpush1.msra.mxu0 %v592
      %909 = vmatprep.subr.mxu0 %v597
      %910 = vmatpush1.msra.mxu0 %v596
      %911 = vmatprep.subr.mxu0 %v601
      %912 = vmatpush1.msra.mxu0 %v600
      %913 = vmatprep.subr.mxu0 %v605
      %914 = vmatpush1.msra.mxu0 %v604
      %915 = vmatprep.subr.mxu0 %v609
      %916 = vmatpush1.msra.mxu0 %v608
      %917 = vmatprep.subr.mxu0 %v613
      %918 = vmatpush1.msra.mxu0 %v612
      %919 = vmatprep.subr.mxu0 %v617
      %920 = vmatpush1.msra.mxu0 %v616
      %921 = vmatprep.subr.mxu0 %v621
      %922 = vmatpush1.msra.mxu0 %v620
      %923 = vmatprep.subr.mxu0 %v625
      %924 = vmatpush1.msra.mxu0 %v624
      %925 = vmatprep.subr.mxu0 0.0
      %926 = vmatpush1.msra.mxu0 0.0
      %927 = vmatprep.subr.mxu0 0.0
      %928 = vmatpush1.msra.mxu0 0.0
      %929 = vmatprep.subr.mxu0 0.0
      %930 = vmatpush1.msra.mxu0 0.0
      %931 = vmatprep.subr.mxu0 0.0
      %932 = vmatpush1.msra.mxu0 0.0
      %933 = vmatprep.subr.mxu0 0.0
      %934 = vmatpush1.msra.mxu0 0.0
      %935 = vmatprep.subr.mxu0 0.0
      %936 = vmatpush1.msra.mxu0 0.0
      %937 = vmatprep.subr.mxu0 0.0
      %938 = vmatpush1.msra.mxu0 0.0
      %939 = vmatprep.subr.mxu0 0.0
      %940 = vmatpush1.msra.mxu0 0.0
      %941 = vmatprep.subr.mxu0 0.0
      %942 = vmatpush1.msra.mxu0 0.0
      %943 = vmatprep.subr.mxu0 0.0
      %944 = vmatpush1.msra.mxu0 0.0
      %945 = vmatprep.subr.mxu0 0.0
      %946 = vmatpush1.msra.mxu0 0.0
      %947 = vmatprep.subr.mxu0 0.0
      %948 = vmatpush1.msra.mxu0 0.0
      %949 = vmatprep.subr.mxu0 0.0
      %950 = vmatpush1.msra.mxu0 0.0
      %951 = vmatprep.subr.mxu0 0.0
      %952 = vmatpush1.msra.mxu0 0.0
      %953 = vmatprep.subr.mxu0 0.0
      %954 = vmatpush1.msra.mxu0 0.0
      %955 = vmatprep.subr.mxu0 0.0
      %956 = vmatpush1.msra.mxu0 0.0
      %957 = vmatprep.mubr.f32.mxu0 0.0
      %958 = vmatmul.mubr.f32.gmra.mrb[0].mxu0 %v798
      %v959 = vpop.f32.mrb[0].mxu0
      %v960 = vadd.f32 0.0, %v959
      %v961 = vpop.f32.mrb[0].mxu0
      %v962 = vadd.f32 0.0, %v961
      %963 = vdwg.mxu0
      %v964 = vadd.f32 %v818, %v889
      %v965 = vadd.f32 %v819, %v891
      %v966 = vadd.f32 %v820, %v960
      %v967 = vadd.f32 %v821, %v962
      %v968 = vmul.f32 %v964, 0.5
      %v969 = vtanh.pop %v968
      %v970 = vmul.f32 %v969, 0.5
      %v971 = vadd.f32 %v970, 0.5
      %v972 = vmul.f32 %v965, 0.5
      %v973 = vtanh.pop %v972
      %v974 = vmul.f32 %v973, 0.5
      %v975 = vadd.f32 %v974, 0.5
      %v976 = vtanh.pop %v966
      %v977 = vmul.f32 %v967, 0.5
      %v978 = vtanh.pop %v977
      %v979 = vmul.f32 %v978, 0.5
      %v980 = vadd.f32 %v979, 0.5
      %v981 = vmul.f32 %v975, %v796
      %v982 = vmul.f32 %v971, %v976
      %v983 = vadd.f32 %v981, %v982
      %v984 = vtanh.pop %v983
      %v985 = vmul.f32 %v980, %v984
      %vm986 = vcmp.gt.s32.totalorder %v626, %v802
      %s987 = sadd.s32 %s627, 2
      %v988 = vstv %s987
      %vm989 = vcmp.eq.s32.totalorder %v626, %v988
      %v990 = vsel %vm986, 1, 0
      %991 = vset.pattern.permute.xlu0 0
      %992 = vperm.xlu0 %991, %v990
      %v993 = vpop.permute.xlu0 %992
      %vm994 = vcmp.eq.s32.totalorder %v993, 1
      %v995 = vsel %vm994, %v985, 0.0
      %s996 = scalar_lea.vmem %s308, 8
      %997 = vst [vmem:[%s996] sm:$0xff] %v995
      %v998 = vsel %vm989, 1, 0
      %999 = vset.pattern.permute.xlu0 0
      %1000 = vperm.xlu0 %999, %v998
      %v1001 = vpop.permute.xlu0 %1000
      %vm1002 = vcmp.eq.s32.totalorder %v1001, 1
      %v1003 = vsel %vm1002, %v985, %v816
      %s1004 = scalar_lea.vmem [#allocation2], 64
      %v1005 = vld [vmem:[%s1004] sm:$0xff]
      %v1006 = vld [vmem:[%s1004 + $0x8] sm:$0xff]
      %v1007 = vld [vmem:[%s1004 + $0x10] sm:$0xff]
      %v1008 = vld [vmem:[%s1004 + $0x18] sm:$0xff]
      %1009 = vmatprep.subr.mxu0 %v563
      %1010 = vmatpush1.msra.mxu0 %v562
      %1011 = vmatprep.subr.mxu0 %v567
      %1012 = vmatpush1.msra.mxu0 %v566
      %1013 = vmatprep.subr.mxu0 %v571
      %1014 = vmatpush1.msra.mxu0 %v570
      %1015 = vmatprep.subr.mxu0 %v575
      %1016 = vmatpush1.msra.mxu0 %v574
      %1017 = vmatprep.subr.mxu0 %v579
      %1018 = vmatpush1.msra.mxu0 %v578
      %1019 = vmatprep.subr.mxu0 %v583
      %1020 = vmatpush1.msra.mxu0 %v582
      %1021 = vmatprep.subr.mxu0 %v587
      %1022 = vmatpush1.msra.mxu0 %v586
      %1023 = vmatprep.subr.mxu0 %v591
      %1024 = vmatpush1.msra.mxu0 %v590
      %1025 = vmatprep.subr.mxu0 %v595
      %1026 = vmatpush1.msra.mxu0 %v594
      %1027 = vmatprep.subr.mxu0 %v599
      %1028 = vmatpush1.msra.mxu0 %v598
      %1029 = vmatprep.subr.mxu0 %v603
      %1030 = vmatpush1.msra.mxu0 %v602
      %1031 = vmatprep.subr.mxu0 %v607
      %1032 = vmatpush1.msra.mxu0 %v606
      %1033 = vmatprep.subr.mxu0 %v611
      %1034 = vmatpush1.msra.mxu0 %v610
      %1035 = vmatprep.subr.mxu0 %v615
      %1036 = vmatpush1.msra.mxu0 %v614
      %1037 = vmatprep.subr.mxu0 %v619
      %1038 = vmatpush1.msra.mxu0 %v618
      %1039 = vmatprep.subr.mxu0 %v623
      %1040 = vmatpush1.msra.mxu0 %v622
      %1041 = vmatprep.subr.mxu0 0.0
      %1042 = vmatpush1.msra.mxu0 0.0
      %1043 = vmatprep.subr.mxu0 0.0
      %1044 = vmatpush1.msra.mxu0 0.0
      %1045 = vmatprep.subr.mxu0 0.0
      %1046 = vmatpush1.msra.mxu0 0.0
      %1047 = vmatprep.subr.mxu0 0.0
      %1048 = vmatpush1.msra.mxu0 0.0
      %1049 = vmatprep.subr.mxu0 0.0
      %1050 = vmatpush1.msra.mxu0 0.0
      %1051 = vmatprep.subr.mxu0 0.0
      %1052 = vmatpush1.msra.mxu0 0.0
      %1053 = vmatprep.subr.mxu0 0.0
      %1054 = vmatpush1.msra.mxu0 0.0
      %1055 = vmatprep.subr.mxu0 0.0
      %1056 = vmatpush1.msra.mxu0 0.0
      %1057 = vmatprep.subr.mxu0 0.0
      %1058 = vmatpush1.msra.mxu0 0.0
      %1059 = vmatprep.subr.mxu0 0.0
      %1060 = vmatpush1.msra.mxu0 0.0
      %1061 = vmatprep.subr.mxu0 0.0
      %1062 = vmatpush1.msra.mxu0 0.0
      %1063 = vmatprep.subr.mxu0 0.0
      %1064 = vmatpush1.msra.mxu0 0.0
      %1065 = vmatprep.subr.mxu0 0.0
      %1066 = vmatpush1.msra.mxu0 0.0
      %1067 = vmatprep.subr.mxu0 0.0
      %1068 = vmatpush1.msra.mxu0 0.0
      %1069 = vmatprep.subr.mxu0 0.0
      %1070 = vmatpush1.msra.mxu0 0.0
      %1071 = vmatprep.subr.mxu0 0.0
      %1072 = vmatpush1.msra.mxu0 0.0
      %1073 = vmatprep.mubr.f32.mxu0 0.0
      %1074 = vmatmul.mubr.f32.gmra.mrb[0].mxu0 %v985
      %v1075 = vpop.f32.mrb[0].mxu0
      %v1076 = vadd.f32 0.0, %v1075
      %v1077 = vpop.f32.mrb[0].mxu0
      %v1078 = vadd.f32 0.0, %v1077
      %1079 = vdwg.mxu0
      %1080 = vmatprep.subr.mxu0 %v565
      %1081 = vmatpush1.msra.mxu0 %v564
      %1082 = vmatprep.subr.mxu0 %v569
      %1083 = vmatpush1.msra.mxu0 %v568
      %1084 = vmatprep.subr.mxu0 %v573
      %1085 = vmatpush1.msra.mxu0 %v572
      %1086 = vmatprep.subr.mxu0 %v577
      %1087 = vmatpush1.msra.mxu0 %v576
      %1088 = vmatprep.subr.mxu0 %v581
      %1089 = vmatpush1.msra.mxu0 %v580
      %1090 = vmatprep.subr.mxu0 %v585
      %1091 = vmatpush1.msra.mxu0 %v584
      %1092 = vmatprep.subr.mxu0 %v589
      %1093 = vmatpush1.msra.mxu0 %v588
      %1094 = vmatprep.subr.mxu0 %v593
      %1095 = vmatpush1.msra.mxu0 %v592
      %1096 = vmatprep.subr.mxu0 %v597
      %1097 = vmatpush1.msra.mxu0 %v596
      %1098 = vmatprep.subr.mxu0 %v601
      %1099 = vmatpush1.msra.mxu0 %v600
      %1100 = vmatprep.subr.mxu0 %v605
      %1101 = vmatpush1.msra.mxu0 %v604
      %1102 = vmatprep.subr.mxu0 %v609
      %1103 = vmatpush1.msra.mxu0 %v608
      %1104 = vmatprep.subr.mxu0 %v613
      %1105 = vmatpush1.msra.mxu0 %v612
      %1106 = vmatprep.subr.mxu0 %v617
      %1107 = vmatpush1.msra.mxu0 %v616
      %1108 = vmatprep.subr.mxu0 %v621
      %1109 = vmatpush1.msra.mxu0 %v620
      %1110 = vmatprep.subr.mxu0 %v625
      %1111 = vmatpush1.msra.mxu0 %v624
      %1112 = vmatprep.subr.mxu0 0.0
      %1113 = vmatpush1.msra.mxu0 0.0
      %1114 = vmatprep.subr.mxu0 0.0
      %1115 = vmatpush1.msra.mxu0 0.0
      %1116 = vmatprep.subr.mxu0 0.0
      %1117 = vmatpush1.msra.mxu0 0.0
      %1118 = vmatprep.subr.mxu0 0.0
      %1119 = vmatpush1.msra.mxu0 0.0
      %1120 = vmatprep.subr.mxu0 0.0
      %1121 = vmatpush1.msra.mxu0 0.0
      %1122 = vmatprep.subr.mxu0 0.0
      %1123 = vmatpush1.msra.mxu0 0.0
      %1124 = vmatprep.subr.mxu0 0.0
      %1125 = vmatpush1.msra.mxu0 0.0
      %1126 = vmatprep.subr.mxu0 0.0
      %1127 = vmatpush1.msra.mxu0 0.0
      %1128 = vmatprep.subr.mxu0 0.0
      %1129 = vmatpush1.msra.mxu0 0.0
      %1130 = vmatprep.subr.mxu0 0.0
      %1131 = vmatpush1.msra.mxu0 0.0
      %1132 = vmatprep.subr.mxu0 0.0
      %1133 = vmatpush1.msra.mxu0 0.0
      %1134 = vmatprep.subr.mxu0 0.0
      %1135 = vmatpush1.msra.mxu0 0.0
      %1136 = vmatprep.subr.mxu0 0.0
      %1137 = vmatpush1.msra.mxu0 0.0
      %1138 = vmatprep.subr.mxu0 0.0
      %1139 = vmatpush1.msra.mxu0 0.0
      %1140 = vmatprep.subr.mxu0 0.0
      %1141 = vmatpush1.msra.mxu0 0.0
      %1142 = vmatprep.subr.mxu0 0.0
      %1143 = vmatpush1.msra.mxu0 0.0
      %1144 = vmatprep.mubr.f32.mxu0 0.0
      %1145 = vmatmul.mubr.f32.gmra.mrb[0].mxu0 %v985
      %v1146 = vpop.f32.mrb[0].mxu0
      %v1147 = vadd.f32 0.0, %v1146
      %v1148 = vpop.f32.mrb[0].mxu0
      %v1149 = vadd.f32 0.0, %v1148
      %1150 = vdwg.mxu0
      %v1151 = vadd.f32 %v1005, %v1076
      %v1152 = vadd.f32 %v1006, %v1078
      %v1153 = vadd.f32 %v1007, %v1147
      %v1154 = vadd.f32 %v1008, %v1149
      %v1155 = vmul.f32 %v1151, 0.5
      %v1156 = vtanh.pop %v1155
      %v1157 = vmul.f32 %v1156, 0.5
      %v1158 = vadd.f32 %v1157, 0.5
      %v1159 = vmul.f32 %v1152, 0.5
      %v1160 = vtanh.pop %v1159
      %v1161 = vmul.f32 %v1160, 0.5
      %v1162 = vadd.f32 %v1161, 0.5
      %v1163 = vtanh.pop %v1153
      %v1164 = vmul.f32 %v1154, 0.5
      %v1165 = vtanh.pop %v1164
      %v1166 = vmul.f32 %v1165, 0.5
      %v1167 = vadd.f32 %v1166, 0.5
      %v1168 = vmul.f32 %v1162, %v983
      %v1169 = vmul.f32 %v1158, %v1163
      %v1170 = vadd.f32 %v1168, %v1169
      %v1171 = vtanh.pop %v1170
      %v1172 = vmul.f32 %v1167, %v1171
      %vm1173 = vcmp.gt.s32.totalorder %v626, %v988
      %s1174 = sadd.s32 %s627, 3
      %v1175 = vstv %s1174
      %vm1176 = vcmp.eq.s32.totalorder %v626, %v1175
      %v1177 = vsel %vm1173, 1, 0
      %1178 = vset.pattern.permute.xlu0 0
      %1179 = vperm.xlu0 %1178, %v1177
      %v1180 = vpop.permute.xlu0 %1179
      %vm1181 = vcmp.eq.s32.totalorder %v1180, 1
      %v1182 = vsel %vm1181, %v1172, 0.0
      %s1183 = scalar_lea.vmem %s308, 16
      %1184 = vst [vmem:[%s1183] sm:$0xff] %v1182
      %v1185 = vsel %vm1176, 1, 0
      %1186 = vset.pattern.permute.xlu0 0
      %1187 = vperm.xlu0 %1186, %v1185
      %v1188 = vpop.permute.xlu0 %1187
      %vm1189 = vcmp.eq.s32.totalorder %v1188, 1
      %v1190 = vsel %vm1189, %v1172, %v1003
      %s1191 = scalar_lea.vmem [#allocation2], 96
      %v1192 = vld [vmem:[%s1191] sm:$0xff]
      %v1193 = vld [vmem:[%s1191 + $0x8] sm:$0xff]
      %v1194 = vld [vmem:[%s1191 + $0x10] sm:$0xff]
      %v1195 = vld [vmem:[%s1191 + $0x18] sm:$0xff]
      %1196 = vmatprep.subr.mxu0 %v563
      %1197 = vmatpush1.msra.mxu0 %v562
      %1198 = vmatprep.subr.mxu0 %v567
      %1199 = vmatpush1.msra.mxu0 %v566
      %1200 = vmatprep.subr.mxu0 %v571
      %1201 = vmatpush1.msra.mxu0 %v570
      %1202 = vmatprep.subr.mxu0 %v575
      %1203 = vmatpush1.msra.mxu0 %v574
      %1204 = vmatprep.subr.mxu0 %v579
      %1205 = vmatpush1.msra.mxu0 %v578
      %1206 = vmatprep.subr.mxu0 %v583
      %1207 = vmatpush1.msra.mxu0 %v582
      %1208 = vmatprep.subr.mxu0 %v587
      %1209 = vmatpush1.msra.mxu0 %v586
      %1210 = vmatprep.subr.mxu0 %v591
      %1211 = vmatpush1.msra.mxu0 %v590
      %1212 = vmatprep.subr.mxu0 %v595
      %1213 = vmatpush1.msra.mxu0 %v594
      %1214 = vmatprep.subr.mxu0 %v599
      %1215 = vmatpush1.msra.mxu0 %v598
      %1216 = vmatprep.subr.mxu0 %v603
      %1217 = vmatpush1.msra.mxu0 %v602
      %1218 = vmatprep.subr.mxu0 %v607
      %1219 = vmatpush1.msra.mxu0 %v606
      %1220 = vmatprep.subr.mxu0 %v611
      %1221 = vmatpush1.msra.mxu0 %v610
      %1222 = vmatprep.subr.mxu0 %v615
      %1223 = vmatpush1.msra.mxu0 %v614
      %1224 = vmatprep.subr.mxu0 %v619
      %1225 = vmatpush1.msra.mxu0 %v618
      %1226 = vmatprep.subr.mxu0 %v623
      %1227 = vmatpush1.msra.mxu0 %v622
      %1228 = vmatprep.subr.mxu0 0.0
      %1229 = vmatpush1.msra.mxu0 0.0
      %1230 = vmatprep.subr.mxu0 0.0
      %1231 = vmatpush1.msra.mxu0 0.0
      %1232 = vmatprep.subr.mxu0 0.0
      %1233 = vmatpush1.msra.mxu0 0.0
      %1234 = vmatprep.subr.mxu0 0.0
      %1235 = vmatpush1.msra.mxu0 0.0
      %1236 = vmatprep.subr.mxu0 0.0
      %1237 = vmatpush1.msra.mxu0 0.0
      %1238 = vmatprep.subr.mxu0 0.0
      %1239 = vmatpush1.msra.mxu0 0.0
      %1240 = vmatprep.subr.mxu0 0.0
      %1241 = vmatpush1.msra.mxu0 0.0
      %1242 = vmatprep.subr.mxu0 0.0
      %1243 = vmatpush1.msra.mxu0 0.0
      %1244 = vmatprep.subr.mxu0 0.0
      %1245 = vmatpush1.msra.mxu0 0.0
      %1246 = vmatprep.subr.mxu0 0.0
      %1247 = vmatpush1.msra.mxu0 0.0
      %1248 = vmatprep.subr.mxu0 0.0
      %1249 = vmatpush1.msra.mxu0 0.0
      %1250 = vmatprep.subr.mxu0 0.0
      %1251 = vmatpush1.msra.mxu0 0.0
      %1252 = vmatprep.subr.mxu0 0.0
      %1253 = vmatpush1.msra.mxu0 0.0
      %1254 = vmatprep.subr.mxu0 0.0
      %1255 = vmatpush1.msra.mxu0 0.0
      %1256 = vmatprep.subr.mxu0 0.0
      %1257 = vmatpush1.msra.mxu0 0.0
      %1258 = vmatprep.subr.mxu0 0.0
      %1259 = vmatpush1.msra.mxu0 0.0
      %1260 = vmatprep.mubr.f32.mxu0 0.0
      %1261 = vmatmul.mubr.f32.gmra.mrb[0].mxu0 %v1172
      %v1262 = vpop.f32.mrb[0].mxu0
      %v1263 = vadd.f32 0.0, %v1262
      %v1264 = vpop.f32.mrb[0].mxu0
      %v1265 = vadd.f32 0.0, %v1264
      %1266 = vdwg.mxu0
      %1267 = vmatprep.subr.mxu0 %v565
      %1268 = vmatpush1.msra.mxu0 %v564
      %1269 = vmatprep.subr.mxu0 %v569
      %1270 = vmatpush1.msra.mxu0 %v568
      %1271 = vmatprep.subr.mxu0 %v573
      %1272 = vmatpush1.msra.mxu0 %v572
      %1273 = vmatprep.subr.mxu0 %v577
      %1274 = vmatpush1.msra.mxu0 %v576
      %1275 = vmatprep.subr.mxu0 %v581
      %1276 = vmatpush1.msra.mxu0 %v580
      %1277 = vmatprep.subr.mxu0 %v585
      %1278 = vmatpush1.msra.mxu0 %v584
      %1279 = vmatprep.subr.mxu0 %v589
      %1280 = vmatpush1.msra.mxu0 %v588
      %1281 = vmatprep.subr.mxu0 %v593
      %1282 = vmatpush1.msra.mxu0 %v592
      %1283 = vmatprep.subr.mxu0 %v597
      %1284 = vmatpush1.msra.mxu0 %v596
      %1285 = vmatprep.subr.mxu0 %v601
      %1286 = vmatpush1.msra.mxu0 %v600
      %1287 = vmatprep.subr.mxu0 %v605
      %1288 = vmatpush1.msra.mxu0 %v604
      %1289 = vmatprep.subr.mxu0 %v609
      %1290 = vmatpush1.msra.mxu0 %v608
      %1291 = vmatprep.subr.mxu0 %v613
      %1292 = vmatpush1.msra.mxu0 %v612
      %1293 = vmatprep.subr.mxu0 %v617
      %1294 = vmatpush1.msra.mxu0 %v616
      %1295 = vmatprep.subr.mxu0 %v621
      %1296 = vmatpush1.msra.mxu0 %v620
      %1297 = vmatprep.subr.mxu0 %v625
      %1298 = vmatpush1.msra.mxu0 %v624
      %1299 = vmatprep.subr.mxu0 0.0
      %1300 = vmatpush1.msra.mxu0 0.0
      %1301 = vmatprep.subr.mxu0 0.0
      %1302 = vmatpush1.msra.mxu0 0.0
      %1303 = vmatprep.subr.mxu0 0.0
      %1304 = vmatpush1.msra.mxu0 0.0
      %1305 = vmatprep.subr.mxu0 0.0
      %1306 = vmatpush1.msra.mxu0 0.0
      %1307 = vmatprep.subr.mxu0 0.0
      %1308 = vmatpush1.msra.mxu0 0.0
      %1309 = vmatprep.subr.mxu0 0.0
      %1310 = vmatpush1.msra.mxu0 0.0
      %1311 = vmatprep.subr.mxu0 0.0
      %1312 = vmatpush1.msra.mxu0 0.0
      %1313 = vmatprep.subr.mxu0 0.0
      %1314 = vmatpush1.msra.mxu0 0.0
      %1315 = vmatprep.subr.mxu0 0.0
      %1316 = vmatpush1.msra.mxu0 0.0
      %1317 = vmatprep.subr.mxu0 0.0
      %1318 = vmatpush1.msra.mxu0 0.0
      %1319 = vmatprep.subr.mxu0 0.0
      %1320 = vmatpush1.msra.mxu0 0.0
      %1321 = vmatprep.subr.mxu0 0.0
      %1322 = vmatpush1.msra.mxu0 0.0
      %1323 = vmatprep.subr.mxu0 0.0
      %1324 = vmatpush1.msra.mxu0 0.0
      %1325 = vmatprep.subr.mxu0 0.0
      %1326 = vmatpush1.msra.mxu0 0.0
      %1327 = vmatprep.subr.mxu0 0.0
      %1328 = vmatpush1.msra.mxu0 0.0
      %1329 = vmatprep.subr.mxu0 0.0
      %1330 = vmatpush1.msra.mxu0 0.0
      %1331 = vmatprep.mubr.f32.mxu0 0.0
      %1332 = vmatmul.mubr.f32.gmra.mrb[0].mxu0 %v1172
      %v1333 = vpop.f32.mrb[0].mxu0
      %v1334 = vadd.f32 0.0, %v1333
      %v1335 = vpop.f32.mrb[0].mxu0
      %v1336 = vadd.f32 0.0, %v1335
      %1337 = vdwg.mxu0
      %v1338 = vadd.f32 %v1192, %v1263
      %v1339 = vadd.f32 %v1193, %v1265
      %v1340 = vadd.f32 %v1194, %v1334
      %v1341 = vadd.f32 %v1195, %v1336
      %v1342 = vmul.f32 %v1338, 0.5
      %v1343 = vtanh.pop %v1342
      %v1344 = vmul.f32 %v1343, 0.5
      %v1345 = vadd.f32 %v1344, 0.5
      %v1346 = vmul.f32 %v1339, 0.5
      %v1347 = vtanh.pop %v1346
      %v1348 = vmul.f32 %v1347, 0.5
      %v1349 = vadd.f32 %v1348, 0.5
      %v1350 = vtanh.pop %v1340
      %v1351 = vmul.f32 %v1341, 0.5
      %v1352 = vtanh.pop %v1351
      %v1353 = vmul.f32 %v1352, 0.5
      %v1354 = vadd.f32 %v1353, 0.5
      %v1355 = vmul.f32 %v1349, %v1170
      %v1356 = vmul.f32 %v1345, %v1350
      %v1357 = vadd.f32 %v1355, %v1356
      %v1358 = vtanh.pop %v1357
      %v1359 = vmul.f32 %v1354, %v1358
      %vm1360 = vcmp.gt.s32.totalorder %v626, %v1175
      %s1361 = sadd.s32 %s627, 4
      %v1362 = vstv %s1361
      %vm1363 = vcmp.eq.s32.totalorder %v626, %v1362
      %v1364 = vsel %vm1360, 1, 0
      %1365 = vset.pattern.permute.xlu0 0
      %1366 = vperm.xlu0 %1365, %v1364
      %v1367 = vpop.permute.xlu0 %1366
      %vm1368 = vcmp.eq.s32.totalorder %v1367, 1
      %v1369 = vsel %vm1368, %v1359, 0.0
      %s1370 = scalar_lea.vmem %s308, 24
      %1371 = vst [vmem:[%s1370] sm:$0xff] %v1369
      %v1372 = vsel %vm1363, 1, 0
      %1373 = vset.pattern.permute.xlu0 0
      %1374 = vperm.xlu0 %1373, %v1372
      %v1375 = vpop.permute.xlu0 %1374
      %vm1376 = vcmp.eq.s32.totalorder %v1375, 1
      %v1377 = vsel %vm1376, %v1359, %v1190
      %1378 = vst [vmem:[#allocation3] sm:$0xff] %v1359
      %1379 = vst [vmem:[#allocation4] sm:$0xff] %v1357
      %1380 = vst [vmem:[%s313] sm:$0xff] %v1377
      %s1381 = smul.u32 4, %s23
      %p1382 = scmp.lt.s32.totalorder %s1381, 7
      %s1383 = scalar_select %p1382, %s1381, 7
      %p1384 = scmp.lt.s32.totalorder %s22, 0
      %s1385 = scalar_select %p1384, %s22, 0
      %s1386 = sadd.s32 %s1385, %s1383
      %s1387 = smul.addr %s1386, 8
      %s1388 = scalar_lea.vmem %s5, %s1387
      %p1389 = scmp.lt.s32.totalorder %s22, 0
      %s1390 = scalar_select %p1389, %s22, 0
      %s1391 = smul.addr %s1390, 8
      %s1392 = scalar_lea.vmem %s6, %s1391
      // Predicated region
      $region45: #{attentive_rnn_forward.1} parent=39 // pred_check
        %p1393 = pneg %p167
      $region46: #{attentive_rnn_forward.1} parent=39 // pred_check_branch
        %1395 = sbr.rel (%p1393) target = $region48
      $region47: #{attentive_rnn_forward.1} parent=39 // pred_region
        %s1396 = smul.u32 4, %s23
      $region48: #{attentive_rnn_forward.1} parent=39 // pred_fallthru
        _
      // Predicated region
      $region49: #{attentive_rnn_forward.1} parent=39 // pred_check
        %p1397 = pneg %p193
      $region50: #{attentive_rnn_forward.1} parent=39 // pred_check_branch
        %1399 = sbr.rel (%p1397) target = $region52
      $region51: #{attentive_rnn_forward.1} parent=39 // pred_region
        _
      $region52: #{attentive_rnn_forward.1} parent=39 // pred_fallthru
        _
      // Predicated region
      $region53: #{attentive_rnn_forward.1} parent=39 // pred_check
        %p1400 = pneg %p193
      $region54: #{attentive_rnn_forward.1} parent=39 // pred_check_branch
        %1402 = sbr.rel (%p1400) target = $region56
      $region55: #{attentive_rnn_forward.1} parent=39 // pred_region
        %p1403 = scmp.lt.s32.totalorder %s22, 0
        %s1404 = scalar_select %p1403, %s22, 0
        %s1405 = smul.addr %s1404, 8
        %s1406 = scalar_lea.vmem %s6, %s1405
      $region56: #{attentive_rnn_forward.1} parent=39 // pred_fallthru
        _
    $region40: #{attentive_rnn_forward.1} parent=5 // pred_fallthru
      _
    %p1407 = scmp.le.s32.totalorder 2, %s13
    // Predicated region
    $region57: #{attentive_rnn_forward.1} parent=5 // pred_check
      %p1408 = pneg %p1407
    $region58: #{attentive_rnn_forward.1} parent=5 // pred_check_branch
      %1410 = sbr.rel (%p1408) target = $region60
    $region59: #{attentive_rnn_forward.1} parent=5 // pred_region
      %s1411 = ssub.s32 %s13, 2
      // Predicated region
      $region61: #{attentive_rnn_forward.1} parent=59 // pred_check
        %p1412 = pneg %p173
      $region62: #{attentive_rnn_forward.1} parent=59 // pred_check_branch
        %1414 = sbr.rel (%p1412) target = $region64
      $region63: #{attentive_rnn_forward.1} parent=59 // pred_region
        %s1415 = smul.u32 4, %s25
        %p1416 = scmp.lt.s32.totalorder %s1415, 7
        %s1417 = scalar_select %p1416, %s1415, 7
        %p1418 = scmp.lt.s32.totalorder %s24, 0
        %s1419 = scalar_select %p1418, %s24, 0
        %s1420 = sadd.s32 %s1419, %s1417
        %s1421 = smul.addr %s1420, 8
        %s1422 = scalar_lea.vmem %s5, %s1421
      $region64: #{attentive_rnn_forward.1} parent=59 // pred_fallthru
        _
    $region60: #{attentive_rnn_forward.1} parent=5 // pred_fallthru
      _
  $region6: #{attentive_rnn_forward.1} parent=0 // loop_footer
    %s17 = sadd.s32 1, %s13
  $region7: #{attentive_rnn_forward.1} parent=0 // loop_footer_branch
    %12 = sbr.rel target = $region3
  $region8: #{attentive_rnn_forward.1} parent=0 // loop_exit
    _

</llo_original>
